<compile_context>
chip_gen: v7x
topology: tpu7x:2x2x1
jax: 0.10.0
libtpu: 0.0.40
codegen_flags: <defaults>
</compile_context>

<pallas_src>
import jax
import jax.numpy as jnp
from jax.experimental import pallas as pl
from jax.experimental.pallas import tpu as pltpu

LOG_STD_MIN = -5.0
LOG_STD_MAX = 5.0
LEAKY_SLOPE = 0.01  # PyTorch default negative_slope for leaky_relu


def _leaky_relu(x):
    # one vmul + one vmax (cheaper than compare+select+mul)
    return jnp.maximum(x, LEAKY_SLOPE * x)


def _round_up(n, m):
    return ((n + m - 1) // m) * m


def _cdiv(a, b):
    return (a + b - 1) // b


# ----------------------------------------------------------------------------
# Kernel
# ----------------------------------------------------------------------------
def _cvae_kernel(
    # activation tiles (batch-gridded, double-buffered)
    obs_ref, acs_ref, noise_ref,
    # encoder weights (VMEM-resident, single-buffered)
    we1o_ref, we1a_ref, be1_ref,
    we2_ref, be2_ref,
    we3_ref, be3_ref,
    # decoder weights
    wd1o_ref, wd1z_ref, bd1_ref,
    wd2_ref, bd2_ref,
    wd3_ref, bd3_ref,
    # outputs (lane-padded; sliced back in the wrapper)
    out_acs_ref, out_ms_ref,
):
    f32 = jnp.float32
    bf16 = jnp.bfloat16
    lp = be3_ref.shape[-1] // 2  # padded latent width (multiple of 128)

    obs = obs_ref[...]
    acs = acs_ref[...]
    obs_b = obs.astype(bf16)
    acs_b = acs.astype(bf16)

    # ---------------- encoder MLP (concat expressed as split first layer) ----
    h = (jnp.dot(obs_b, we1o_ref[...], preferred_element_type=f32)
         + jnp.dot(acs_b, we1a_ref[...], preferred_element_type=f32)
         + be1_ref[...])
    h = _leaky_relu(h)
    h = _leaky_relu(jnp.dot(h.astype(bf16), we2_ref[...],
                            preferred_element_type=f32) + be2_ref[...])

    # fused head: one dot, columns [0:lp) = mu, [lp:2lp) = log_std (128-aligned)
    y = jnp.dot(h.astype(bf16), we3_ref[...],
                preferred_element_type=f32) + be3_ref[...]
    mu = y[:, :lp]
    log_std = jnp.clip(y[:, lp:], LOG_STD_MIN, LOG_STD_MAX)
    std = jnp.exp(log_std)

    # ---------------- reparameterization -------------------------------------
    # Padded std cols = exp(0) = 1 and padded mu cols = 0, so padded z columns
    # just carry (arbitrary) padded-noise values; they hit zero rows of wd1_z
    # in the decoder and are therefore inert.
    z = mu + noise_ref[...] * std

    # ---------------- decoder MLP (split first layer: obs / z) ---------------
    d = (jnp.dot(obs_b, wd1o_ref[...], preferred_element_type=f32)
         + jnp.dot(z.astype(bf16), wd1z_ref[...], preferred_element_type=f32)
         + bd1_ref[...])
    d = _leaky_relu(d)
    d = _leaky_relu(jnp.dot(d.astype(bf16), wd2_ref[...],
                            preferred_element_type=f32) + bd2_ref[...])
    acs_out = jnp.dot(d.astype(bf16), wd3_ref[...],
                      preferred_element_type=f32) + bd3_ref[...]

    out_acs_ref[...] = acs_out.astype(out_acs_ref.dtype)
    # single lane-dense output block: [mu | std], both slices 128-aligned
    out_ms_ref[:, :lp] = mu.astype(out_ms_ref.dtype)
    out_ms_ref[:, lp:] = std.astype(out_ms_ref.dtype)


# ----------------------------------------------------------------------------
# Parameter prep (one-time): split + zero-pad + cast MXU operands to bf16
# ----------------------------------------------------------------------------
def _pad2(w, rows, cols):
    return jnp.pad(w, ((0, rows - w.shape[0]), (0, cols - w.shape[1])))


def _pad_bias(b, cols):
    return jnp.pad(b, (0, cols - b.shape[0])).reshape(1, cols)


def init_params(key, ob_dim, ac_dim, lat_ac_dim, size):
    """Logical (PyTorch-layout-equivalent) parameters, weights stored (in, out), f32."""
    keys = jax.random.split(key, 12)

    def w(k, fi, fo):
        return jax.random.normal(k, (fi, fo), jnp.float32) / jnp.sqrt(fi)

    def b(k, fo):
        return jax.random.normal(k, (fo,), jnp.float32) * 0.01

    return {
        # encoder: (ob+ac) -> size -> size -> 2*lat
        "we1": w(keys[0], ob_dim + ac_dim, size), "be1": b(keys[1], size),
        "we2": w(keys[2], size, size),            "be2": b(keys[3], size),
        "we3": w(keys[4], size, 2 * lat_ac_dim),  "be3": b(keys[5], 2 * lat_ac_dim),
        # decoder: (ob+lat) -> size -> size -> ac
        "wd1": w(keys[6], ob_dim + lat_ac_dim, size), "bd1": b(keys[7], size),
        "wd2": w(keys[8], size, size),                "bd2": b(keys[9], size),
        "wd3": w(keys[10], size, ac_dim),             "bd3": b(keys[11], ac_dim),
    }


def prepare_params(params, ob_dim, ac_dim, lat_ac_dim, size,
                   weight_dtype=jnp.bfloat16):
    """Split concat/head weights, zero-pad feature dims, cast weights to bf16.

    Zero-padding is exact: padded rows/cols contribute 0.0 to every dot (zeros
    are exact in bf16), padded mu cols are 0, padded std cols are exp(0)=1 and
    the matching zero rows of wd1_z make padded z columns inert.  Hidden size
    is padded to a multiple of 256 (256x256 MXU on v6e/v7x); latent/action
    dims to multiples of 128 lanes.  Biases stay f32 (VPU adds).
    """
    sp = _round_up(size, 256)
    lp = _round_up(lat_ac_dim, 128)
    ap = _round_up(ac_dim, 128)

    we1, we3, wd1 = params["we1"], params["we3"], params["wd1"]
    wcast = lambda a: a.astype(weight_dtype)

    # fused encoder head: columns [0:lp) = mu part, [lp:2lp) = log_std part
    we3_mu = _pad2(we3[:, :lat_ac_dim], sp, lp)
    we3_ls = _pad2(we3[:, lat_ac_dim:], sp, lp)
    be3_mu = jnp.pad(params["be3"][:lat_ac_dim], (0, lp - lat_ac_dim))
    be3_ls = jnp.pad(params["be3"][lat_ac_dim:], (0, lp - lat_ac_dim))

    return {
        "we1_obs": wcast(_pad2(we1[:ob_dim], ob_dim, sp)),
        "we1_acs": wcast(_pad2(we1[ob_dim:], ac_dim, sp)),
        "be1": _pad_bias(params["be1"], sp),
        "we2": wcast(_pad2(params["we2"], sp, sp)),
        "be2": _pad_bias(params["be2"], sp),
        "we3": wcast(jnp.concatenate([we3_mu, we3_ls], axis=1)),        # (sp, 2*lp)
        "be3": jnp.concatenate([be3_mu, be3_ls]).reshape(1, 2 * lp),    # f32
        "wd1_obs": wcast(_pad2(wd1[:ob_dim], ob_dim, sp)),
        "wd1_z": wcast(_pad2(wd1[ob_dim:], lp, sp)),
        "bd1": _pad_bias(params["bd1"], sp),
        "wd2": wcast(_pad2(params["wd2"], sp, sp)),
        "bd2": _pad_bias(params["bd2"], sp),
        "wd3": wcast(_pad2(params["wd3"], sp, ap)),
        "bd3": _pad_bias(params["bd3"], ap),
    }


# ----------------------------------------------------------------------------
# Tiling / VMEM policy
# ----------------------------------------------------------------------------
def _vmem_capacity_bytes():
    try:
        return int(pltpu.get_tpu_info().vmem_capacity_bytes)
    except Exception:
        return 64 << 20  # conservative fallback (v7x per-TC VMEM)


def _batch_tiling(B, vmem_cap_bytes):
    """Return (TB, B_pad): batch tile and zero-padded batch.

    TB cap is 512 on 128-MiB-VMEM chips (v5e/v6e), 256 on v7x.  Whenever the
    (8-padded) batch is >= 16 we keep at least 2 grid steps so the 'parallel'
    batch axis can be split across v7x's two TensorCores (megacore on v6e).
    """
    cap = 512 if vmem_cap_bytes >= (96 << 20) else 256
    b8 = _round_up(B, 8)
    if b8 <= 8:
        return 8, 8
    n_steps = max(2, _cdiv(b8, cap))
    tb = _round_up(_cdiv(b8, n_steps), 8)
    return tb, tb * n_steps


# ----------------------------------------------------------------------------
# Wrapper
# ----------------------------------------------------------------------------
def cvae_forward(obs, acs, noise, pp, lat_ac_dim):
    """CVAE forward pass in a single batch-gridded Pallas kernel.

    obs:   (B, ob_dim) f32
    acs:   (B, ac_dim) f32
    noise: (B, lp) f32 pre-padded standard-normal buffer (recommended: reuse
           across calls), or (B, lat_ac_dim) which is padded here (compat).
           Columns >= lat_ac_dim are ignored by construction.
    pp:    prepare_params() output (split, lane-padded, bf16 weights).
    Returns (pred_acs, mu, std) at logical (unpadded) shapes.
    """
    B, ob_dim = obs.shape
    ac_dim = acs.shape[1]
    sp = pp["we2"].shape[0]            # padded hidden size
    lp = pp["we3"].shape[1] // 2       # padded latent dim
    ap = pp["wd3"].shape[1]            # padded action dim

    if noise.shape[1] != lp:           # compat path: pad logical-width noise once
        noise = jnp.pad(noise, ((0, 0), (0, lp - noise.shape[1])))

    vmem_cap = _vmem_capacity_bytes()
    TB, B_pad = _batch_tiling(B, vmem_cap)

    if B_pad != B:
        pad_r = B_pad - B
        obs_p = jnp.pad(obs, ((0, pad_r), (0, 0)))
        acs_p = jnp.pad(acs, ((0, pad_r), (0, 0)))
        noise_p = jnp.pad(noise, ((0, pad_r), (0, 0)))
    else:
        obs_p, acs_p, noise_p = obs, acs, noise

    grid = (B_pad // TB,)

    def act_spec(feat):
        return pl.BlockSpec((TB, feat), lambda i: (i, 0))

    def w_spec(arr):
        # constant block index -> VMEM-resident; single-buffered (no DMA to hide)
        return pl.BlockSpec(arr.shape, lambda i: (0, 0),
                            pipeline_mode=pl.Buffered(1))

    weight_order = (
        "we1_obs", "we1_acs", "be1",
        "we2", "be2",
        "we3", "be3",
        "wd1_obs", "wd1_z", "bd1",
        "wd2", "bd2",
        "wd3", "bd3",
    )
    weights = tuple(pp[name] for name in weight_order)

    in_specs = [act_spec(ob_dim), act_spec(ac_dim), act_spec(lp)] + \
               [w_spec(w) for w in weights]
    out_specs = (act_spec(ap), act_spec(2 * lp))
    out_shape = (
        jax.ShapeDtypeStruct((B_pad, ap), jnp.float32),
        jax.ShapeDtypeStruct((B_pad, 2 * lp), jnp.float32),
    )

    # explicit VMEM budget: weights x 1 buffer + f32 activation/output tiles x 2
    weight_bytes = sum(int(w.size) * w.dtype.itemsize for w in weights)
    io_feats = ob_dim + ac_dim + lp + ap + 2 * lp
    io_tile_bytes = 4 * TB * io_feats * 2
    vmem_needed = weight_bytes + io_tile_bytes
    vmem_limit = int(min(max(int(vmem_needed * 1.25) + (4 << 20), 32 << 20),
                         int(0.75 * vmem_cap)))

    # advisory cost estimate so XLA overlaps surrounding ops with the call
    flops = 2 * B_pad * (
        (ob_dim + ac_dim) * sp        # enc L1
        + sp * sp                     # enc L2
        + sp * 2 * lp                 # enc head (mu | log_std)
        + (ob_dim + lp) * sp          # dec L1
        + sp * sp                     # dec L2
        + sp * ap                     # dec out
    )
    cost = pl.CostEstimate(
        flops=flops,
        transcendentals=B_pad * lp,   # exp(log_std)
        bytes_accessed=weight_bytes + 4 * B_pad * io_feats,
    )

    acs_out, ms_out = pl.pallas_call(
        _cvae_kernel,
        out_shape=out_shape,
        grid=grid,
        in_specs=in_specs,
        out_specs=out_specs,
        compiler_params=pltpu.CompilerParams(
            dimension_semantics=("parallel",),
            vmem_limit_bytes=vmem_limit),
        cost_estimate=cost,
    )(obs_p, acs_p, noise_p, *weights)

    pred_acs = acs_out[:B, :ac_dim]
    mu = ms_out[:B, :lat_ac_dim]
    std = ms_out[:B, lp:lp + lat_ac_dim]
    return pred_acs, mu, std


# ----------------------------------------------------------------------------
# Pure-JAX f32 reference (mirrors CVAE.forward exactly)
# ----------------------------------------------------------------------------
def cvae_forward_ref(obs, acs, noise, params, lat_ac_dim):
    x = jnp.concatenate([obs, acs], axis=-1)
    h = _leaky_relu(x @ params["we1"] + params["be1"])
    h = _leaky_relu(h @ params["we2"] + params["be2"])
    mls = h @ params["we3"] + params["be3"]
    mu = mls[:, :lat_ac_dim]
    log_std = jnp.clip(mls[:, lat_ac_dim:], LOG_STD_MIN, LOG_STD_MAX)
    std = jnp.exp(log_std)
    z = mu + noise * std
    d = _leaky_relu(jnp.concatenate([obs, z], axis=-1) @ params["wd1"] + params["bd1"])
    d = _leaky_relu(d @ params["wd2"] + params["bd2"])
    acs_pred = d @ params["wd3"] + params["bd3"]
    return acs_pred, mu, std


if __name__ == "__main__":
    # Small shapes consistent with the module's forward (obs/acs are 2-D).
    B, OB_DIM, AC_DIM, LAT_AC_DIM, SIZE = 8, 16, 8, 4, 32

    key = jax.random.PRNGKey(0)
    k_obs, k_acs, k_noise, k_params = jax.random.split(key, 4)

    obs = jax.random.normal(k_obs, (B, OB_DIM), jnp.float32)
    acs = jax.random.normal(k_acs, (B, AC_DIM), jnp.float32)

    params = init_params(k_params, OB_DIM, AC_DIM, LAT_AC_DIM, SIZE)
    padded_params = prepare_params(params, OB_DIM, AC_DIM, LAT_AC_DIM, SIZE)
    LP = padded_params["we3"].shape[1] // 2

    # th.randn_like(std) equivalent — drawn once, at padded width, so the
    # kernel consumes a reusable pre-padded noise buffer (perf-review item);
    # the extra columns are inert.  The f32 reference uses the logical slice.
    noise_padded = jax.random.normal(k_noise, (B, LP), jnp.float32)
    noise_logical = noise_padded[:, :LAT_AC_DIM]

    pred_acs, mu, std = cvae_forward(obs, acs, noise_padded, padded_params, LAT_AC_DIM)
    jax.block_until_ready((pred_acs, mu, std))

    ref_acs, ref_mu, ref_std = cvae_forward_ref(obs, acs, noise_logical, params,
                                                LAT_AC_DIM)
    assert pred_acs.shape == (B, AC_DIM)
    assert mu.shape == (B, LAT_AC_DIM) and std.shape == (B, LAT_AC_DIM)
    # bf16 MXU operands -> relaxed tolerance vs the f32 reference
    assert jnp.allclose(pred_acs, ref_acs, atol=5e-2, rtol=5e-2)
    assert jnp.allclose(mu, ref_mu, atol=5e-2, rtol=5e-2)
    assert jnp.allclose(std, ref_std, atol=5e-2, rtol=5e-2)

    print("KERNEL_OK")
</pallas_src>

<mosaic_0001>
module attributes {stable_mosaic.version = 11 : i64} {
  func.func @_cvae_kernel(%arg0: i32, %arg1: memref<8x16xf32, #tpu.memory_space<vmem>>, %arg2: memref<8x8xf32, #tpu.memory_space<vmem>>, %arg3: memref<8x128xf32, #tpu.memory_space<vmem>>, %arg4: memref<16x256xbf16, #tpu.memory_space<vmem>>, %arg5: memref<8x256xbf16, #tpu.memory_space<vmem>>, %arg6: memref<1x256xf32, #tpu.memory_space<vmem>>, %arg7: memref<256x256xbf16, #tpu.memory_space<vmem>>, %arg8: memref<1x256xf32, #tpu.memory_space<vmem>>, %arg9: memref<256x256xbf16, #tpu.memory_space<vmem>>, %arg10: memref<1x256xf32, #tpu.memory_space<vmem>>, %arg11: memref<16x256xbf16, #tpu.memory_space<vmem>>, %arg12: memref<128x256xbf16, #tpu.memory_space<vmem>>, %arg13: memref<1x256xf32, #tpu.memory_space<vmem>>, %arg14: memref<256x256xbf16, #tpu.memory_space<vmem>>, %arg15: memref<1x256xf32, #tpu.memory_space<vmem>>, %arg16: memref<256x128xbf16, #tpu.memory_space<vmem>>, %arg17: memref<1x128xf32, #tpu.memory_space<vmem>>, %arg18: memref<8x128xf32, #tpu.memory_space<vmem>>, %arg19: memref<8x256xf32, #tpu.memory_space<vmem>>) attributes {dimension_semantics = [#tpu.dimension_semantics<parallel>], iteration_bounds = array<i64: 1>, scalar_prefetch = 0 : i64, scratch_operands = 0 : i64, tpu.core_type = #tpu.core_type<tc>, window_params = [{transform_indices = @transform_0, window_bounds = array<i64: 8, 16>}, {transform_indices = @transform_1, window_bounds = array<i64: 8, 8>}, {transform_indices = @transform_2, window_bounds = array<i64: 8, 128>}, {pipeline_mode = #tpu.pipeline_mode<synchronous>, transform_indices = @transform_3, window_bounds = array<i64: 16, 256>}, {pipeline_mode = #tpu.pipeline_mode<synchronous>, transform_indices = @transform_4, window_bounds = array<i64: 8, 256>}, {pipeline_mode = #tpu.pipeline_mode<synchronous>, transform_indices = @transform_5, window_bounds = array<i64: 1, 256>}, {pipeline_mode = #tpu.pipeline_mode<synchronous>, transform_indices = @transform_6, window_bounds = array<i64: 256, 256>}, {pipeline_mode = #tpu.pipeline_mode<synchronous>, transform_indices = @transform_7, window_bounds = array<i64: 1, 256>}, {pipeline_mode = #tpu.pipeline_mode<synchronous>, transform_indices = @transform_8, window_bounds = array<i64: 256, 256>}, {pipeline_mode = #tpu.pipeline_mode<synchronous>, transform_indices = @transform_9, window_bounds = array<i64: 1, 256>}, {pipeline_mode = #tpu.pipeline_mode<synchronous>, transform_indices = @transform_10, window_bounds = array<i64: 16, 256>}, {pipeline_mode = #tpu.pipeline_mode<synchronous>, transform_indices = @transform_11, window_bounds = array<i64: 128, 256>}, {pipeline_mode = #tpu.pipeline_mode<synchronous>, transform_indices = @transform_12, window_bounds = array<i64: 1, 256>}, {pipeline_mode = #tpu.pipeline_mode<synchronous>, transform_indices = @transform_13, window_bounds = array<i64: 256, 256>}, {pipeline_mode = #tpu.pipeline_mode<synchronous>, transform_indices = @transform_14, window_bounds = array<i64: 1, 256>}, {pipeline_mode = #tpu.pipeline_mode<synchronous>, transform_indices = @transform_15, window_bounds = array<i64: 256, 128>}, {pipeline_mode = #tpu.pipeline_mode<synchronous>, transform_indices = @transform_16, window_bounds = array<i64: 1, 128>}, {transform_indices = @transform_17, window_bounds = array<i64: 8, 128>}, {transform_indices = @transform_18, window_bounds = array<i64: 8, 256>}]} {
    %c0 = arith.constant 0 : index
    %c0_0 = arith.constant 0 : index
    %0 = vector.load %arg1[%c0, %c0_0] : memref<8x16xf32, #tpu.memory_space<vmem>>, vector<8x16xf32>
    %c0_1 = arith.constant 0 : index
    %c0_2 = arith.constant 0 : index
    %1 = vector.load %arg2[%c0_1, %c0_2] : memref<8x8xf32, #tpu.memory_space<vmem>>, vector<8x8xf32>
    %2 = arith.truncf %0 : vector<8x16xf32> to vector<8x16xbf16>
    %3 = arith.truncf %1 : vector<8x8xf32> to vector<8x8xbf16>
    %c0_3 = arith.constant 0 : index
    %c0_4 = arith.constant 0 : index
    %4 = vector.load %arg4[%c0_3, %c0_4] : memref<16x256xbf16, #tpu.memory_space<vmem>>, vector<16x256xbf16>
    %cst = arith.constant dense<0.000000e+00> : vector<8x256xf32>
    %5 = tpu.matmul %2, %4, %cst {dimension_numbers = #tpu.dot_dimension_numbers<[1], [0], [0], [1], [0, 0, 1, 1], [], []>} : vector<8x16xbf16>, vector<16x256xbf16>, vector<8x256xf32> -> vector<8x256xf32>
    %c0_5 = arith.constant 0 : index
    %c0_6 = arith.constant 0 : index
    %6 = vector.load %arg5[%c0_5, %c0_6] : memref<8x256xbf16, #tpu.memory_space<vmem>>, vector<8x256xbf16>
    %cst_7 = arith.constant dense<0.000000e+00> : vector<8x256xf32>
    %7 = tpu.matmul %3, %6, %cst_7 {dimension_numbers = #tpu.dot_dimension_numbers<[1], [0], [0], [1], [0, 0, 1, 1], [], []>} : vector<8x8xbf16>, vector<8x256xbf16>, vector<8x256xf32> -> vector<8x256xf32>
    %8 = arith.addf %5, %7 : vector<8x256xf32>
    %c0_8 = arith.constant 0 : index
    %c0_9 = arith.constant 0 : index
    %9 = vector.load %arg6[%c0_8, %c0_9] : memref<1x256xf32, #tpu.memory_space<vmem>>, vector<1x256xf32>
    %10 = vector.broadcast %9 : vector<1x256xf32> to vector<8x256xf32>
    %11 = arith.addf %8, %10 : vector<8x256xf32>
    %cst_10 = arith.constant 0.00999999977 : f32
    %12 = vector.broadcast %cst_10 : f32 to vector<8x256xf32>
    %13 = arith.mulf %12, %11 : vector<8x256xf32>
    %14 = arith.maximumf %11, %13 : vector<8x256xf32>
    %15 = arith.truncf %14 : vector<8x256xf32> to vector<8x256xbf16>
    %c0_11 = arith.constant 0 : index
    %c0_12 = arith.constant 0 : index
    %16 = vector.load %arg7[%c0_11, %c0_12] : memref<256x256xbf16, #tpu.memory_space<vmem>>, vector<256x256xbf16>
    %cst_13 = arith.constant dense<0.000000e+00> : vector<8x256xf32>
    %17 = tpu.matmul %15, %16, %cst_13 {dimension_numbers = #tpu.dot_dimension_numbers<[1], [0], [0], [1], [0, 0, 1, 1], [], []>} : vector<8x256xbf16>, vector<256x256xbf16>, vector<8x256xf32> -> vector<8x256xf32>
    %c0_14 = arith.constant 0 : index
    %c0_15 = arith.constant 0 : index
    %18 = vector.load %arg8[%c0_14, %c0_15] : memref<1x256xf32, #tpu.memory_space<vmem>>, vector<1x256xf32>
    %19 = vector.broadcast %18 : vector<1x256xf32> to vector<8x256xf32>
    %20 = arith.addf %17, %19 : vector<8x256xf32>
    %cst_16 = arith.constant 0.00999999977 : f32
    %21 = vector.broadcast %cst_16 : f32 to vector<8x256xf32>
    %22 = arith.mulf %21, %20 : vector<8x256xf32>
    %23 = arith.maximumf %20, %22 : vector<8x256xf32>
    %24 = arith.truncf %23 : vector<8x256xf32> to vector<8x256xbf16>
    %c0_17 = arith.constant 0 : index
    %c0_18 = arith.constant 0 : index
    %25 = vector.load %arg9[%c0_17, %c0_18] : memref<256x256xbf16, #tpu.memory_space<vmem>>, vector<256x256xbf16>
    %cst_19 = arith.constant dense<0.000000e+00> : vector<8x256xf32>
    %26 = tpu.matmul %24, %25, %cst_19 {dimension_numbers = #tpu.dot_dimension_numbers<[1], [0], [0], [1], [0, 0, 1, 1], [], []>} : vector<8x256xbf16>, vector<256x256xbf16>, vector<8x256xf32> -> vector<8x256xf32>
    %c0_20 = arith.constant 0 : index
    %c0_21 = arith.constant 0 : index
    %27 = vector.load %arg10[%c0_20, %c0_21] : memref<1x256xf32, #tpu.memory_space<vmem>>, vector<1x256xf32>
    %28 = vector.broadcast %27 : vector<1x256xf32> to vector<8x256xf32>
    %29 = arith.addf %26, %28 : vector<8x256xf32>
    %30 = vector.extract_strided_slice %29 {offsets = [0, 0], sizes = [8, 128], strides = [1, 1]} : vector<8x256xf32> to vector<8x128xf32>
    %31 = vector.extract_strided_slice %29 {offsets = [0, 128], sizes = [8, 128], strides = [1, 1]} : vector<8x256xf32> to vector<8x128xf32>
    %cst_22 = arith.constant -5.000000e+00 : f32
    %cst_23 = arith.constant 5.000000e+00 : f32
    %32 = vector.broadcast %cst_22 : f32 to vector<8x128xf32>
    %33 = arith.maximumf %32, %31 : vector<8x128xf32>
    %34 = vector.broadcast %cst_23 : f32 to vector<8x128xf32>
    %35 = arith.minimumf %34, %33 : vector<8x128xf32>
    %36 = math.exp %35 : vector<8x128xf32>
    %c0_24 = arith.constant 0 : index
    %c0_25 = arith.constant 0 : index
    %37 = vector.load %arg3[%c0_24, %c0_25] : memref<8x128xf32, #tpu.memory_space<vmem>>, vector<8x128xf32>
    %38 = arith.mulf %37, %36 : vector<8x128xf32>
    %39 = arith.addf %30, %38 : vector<8x128xf32>
    %c0_26 = arith.constant 0 : index
    %c0_27 = arith.constant 0 : index
    %40 = vector.load %arg11[%c0_26, %c0_27] : memref<16x256xbf16, #tpu.memory_space<vmem>>, vector<16x256xbf16>
    %cst_28 = arith.constant dense<0.000000e+00> : vector<8x256xf32>
    %41 = tpu.matmul %2, %40, %cst_28 {dimension_numbers = #tpu.dot_dimension_numbers<[1], [0], [0], [1], [0, 0, 1, 1], [], []>} : vector<8x16xbf16>, vector<16x256xbf16>, vector<8x256xf32> -> vector<8x256xf32>
    %42 = arith.truncf %39 : vector<8x128xf32> to vector<8x128xbf16>
    %c0_29 = arith.constant 0 : index
    %c0_30 = arith.constant 0 : index
    %43 = vector.load %arg12[%c0_29, %c0_30] : memref<128x256xbf16, #tpu.memory_space<vmem>>, vector<128x256xbf16>
    %cst_31 = arith.constant dense<0.000000e+00> : vector<8x256xf32>
    %44 = tpu.matmul %42, %43, %cst_31 {dimension_numbers = #tpu.dot_dimension_numbers<[1], [0], [0], [1], [0, 0, 1, 1], [], []>} : vector<8x128xbf16>, vector<128x256xbf16>, vector<8x256xf32> -> vector<8x256xf32>
    %45 = arith.addf %41, %44 : vector<8x256xf32>
    %c0_32 = arith.constant 0 : index
    %c0_33 = arith.constant 0 : index
    %46 = vector.load %arg13[%c0_32, %c0_33] : memref<1x256xf32, #tpu.memory_space<vmem>>, vector<1x256xf32>
    %47 = vector.broadcast %46 : vector<1x256xf32> to vector<8x256xf32>
    %48 = arith.addf %45, %47 : vector<8x256xf32>
    %cst_34 = arith.constant 0.00999999977 : f32
    %49 = vector.broadcast %cst_34 : f32 to vector<8x256xf32>
    %50 = arith.mulf %49, %48 : vector<8x256xf32>
    %51 = arith.maximumf %48, %50 : vector<8x256xf32>
    %52 = arith.truncf %51 : vector<8x256xf32> to vector<8x256xbf16>
    %c0_35 = arith.constant 0 : index
    %c0_36 = arith.constant 0 : index
    %53 = vector.load %arg14[%c0_35, %c0_36] : memref<256x256xbf16, #tpu.memory_space<vmem>>, vector<256x256xbf16>
    %cst_37 = arith.constant dense<0.000000e+00> : vector<8x256xf32>
    %54 = tpu.matmul %52, %53, %cst_37 {dimension_numbers = #tpu.dot_dimension_numbers<[1], [0], [0], [1], [0, 0, 1, 1], [], []>} : vector<8x256xbf16>, vector<256x256xbf16>, vector<8x256xf32> -> vector<8x256xf32>
    %c0_38 = arith.constant 0 : index
    %c0_39 = arith.constant 0 : index
    %55 = vector.load %arg15[%c0_38, %c0_39] : memref<1x256xf32, #tpu.memory_space<vmem>>, vector<1x256xf32>
    %56 = vector.broadcast %55 : vector<1x256xf32> to vector<8x256xf32>
    %57 = arith.addf %54, %56 : vector<8x256xf32>
    %cst_40 = arith.constant 0.00999999977 : f32
    %58 = vector.broadcast %cst_40 : f32 to vector<8x256xf32>
    %59 = arith.mulf %58, %57 : vector<8x256xf32>
    %60 = arith.maximumf %57, %59 : vector<8x256xf32>
    %61 = arith.truncf %60 : vector<8x256xf32> to vector<8x256xbf16>
    %c0_41 = arith.constant 0 : index
    %c0_42 = arith.constant 0 : index
    %62 = vector.load %arg16[%c0_41, %c0_42] : memref<256x128xbf16, #tpu.memory_space<vmem>>, vector<256x128xbf16>
    %cst_43 = arith.constant dense<0.000000e+00> : vector<8x128xf32>
    %63 = tpu.matmul %61, %62, %cst_43 {dimension_numbers = #tpu.dot_dimension_numbers<[1], [0], [0], [1], [0, 0, 1, 1], [], []>} : vector<8x256xbf16>, vector<256x128xbf16>, vector<8x128xf32> -> vector<8x128xf32>
    %c0_44 = arith.constant 0 : index
    %c0_45 = arith.constant 0 : index
    %64 = vector.load %arg17[%c0_44, %c0_45] : memref<1x128xf32, #tpu.memory_space<vmem>>, vector<1x128xf32>
    %65 = vector.broadcast %64 : vector<1x128xf32> to vector<8x128xf32>
    %66 = arith.addf %63, %65 : vector<8x128xf32>
    %c0_46 = arith.constant 0 : index
    %c0_47 = arith.constant 0 : index
    %67 = vector.load %arg18[%c0_46, %c0_47] : memref<8x128xf32, #tpu.memory_space<vmem>>, vector<8x128xf32>
    tpu.vector_store %arg18[%c0_46, %c0_47], %66 {strides = array<i32>} : memref<8x128xf32, #tpu.memory_space<vmem>>, vector<8x128xf32>,
    %c0_48 = arith.constant 0 : index
    %c0_49 = arith.constant 0 : index
    %68 = vector.load %arg19[%c0_48, %c0_49] : memref<8x256xf32, #tpu.memory_space<vmem>>, vector<8x128xf32>
    tpu.vector_store %arg19[%c0_48, %c0_49], %30 {strides = array<i32>} : memref<8x256xf32, #tpu.memory_space<vmem>>, vector<8x128xf32>,
    %c0_50 = arith.constant 0 : index
    %c128 = arith.constant 128 : index
    %69 = vector.load %arg19[%c0_50, %c128] : memref<8x256xf32, #tpu.memory_space<vmem>>, vector<8x128xf32>
    tpu.vector_store %arg19[%c0_50, %c128], %36 {strides = array<i32>} : memref<8x256xf32, #tpu.memory_space<vmem>>, vector<8x128xf32>,
    return
  }
  func.func @transform_0(%arg0: i32) -> (i32, i32) {
    %c0_i32 = arith.constant 0 : i32
    %c0_i32_0 = arith.constant 0 : i32
    return %arg0, %c0_i32 : i32, i32
  }
  func.func @transform_1(%arg0: i32) -> (i32, i32) {
    %c0_i32 = arith.constant 0 : i32
    %c0_i32_0 = arith.constant 0 : i32
    return %arg0, %c0_i32 : i32, i32
  }
  func.func @transform_2(%arg0: i32) -> (i32, i32) {
    %c0_i32 = arith.constant 0 : i32
    %c0_i32_0 = arith.constant 0 : i32
    return %arg0, %c0_i32 : i32, i32
  }
  func.func @transform_3(%arg0: i32) -> (i32, i32) {
    %c0_i32 = arith.constant 0 : i32
    %c0_i32_0 = arith.constant 0 : i32
    %c0_i32_1 = arith.constant 0 : i32
    return %c0_i32, %c0_i32_0 : i32, i32
  }
  func.func @transform_4(%arg0: i32) -> (i32, i32) {
    %c0_i32 = arith.constant 0 : i32
    %c0_i32_0 = arith.constant 0 : i32
    %c0_i32_1 = arith.constant 0 : i32
    return %c0_i32, %c0_i32_0 : i32, i32
  }
  func.func @transform_5(%arg0: i32) -> (i32, i32) {
    %c0_i32 = arith.constant 0 : i32
    %c0_i32_0 = arith.constant 0 : i32
    %c0_i32_1 = arith.constant 0 : i32
    return %c0_i32, %c0_i32_0 : i32, i32
  }
  func.func @transform_6(%arg0: i32) -> (i32, i32) {
    %c0_i32 = arith.constant 0 : i32
    %c0_i32_0 = arith.constant 0 : i32
    %c0_i32_1 = arith.constant 0 : i32
    return %c0_i32, %c0_i32_0 : i32, i32
  }
  func.func @transform_7(%arg0: i32) -> (i32, i32) {
    %c0_i32 = arith.constant 0 : i32
    %c0_i32_0 = arith.constant 0 : i32
    %c0_i32_1 = arith.constant 0 : i32
    return %c0_i32, %c0_i32_0 : i32, i32
  }
  func.func @transform_8(%arg0: i32) -> (i32, i32) {
    %c0_i32 = arith.constant 0 : i32
    %c0_i32_0 = arith.constant 0 : i32
    %c0_i32_1 = arith.constant 0 : i32
    return %c0_i32, %c0_i32_0 : i32, i32
  }
  func.func @transform_9(%arg0: i32) -> (i32, i32) {
    %c0_i32 = arith.constant 0 : i32
    %c0_i32_0 = arith.constant 0 : i32
    %c0_i32_1 = arith.constant 0 : i32
    return %c0_i32, %c0_i32_0 : i32, i32
  }
  func.func @transform_10(%arg0: i32) -> (i32, i32) {
    %c0_i32 = arith.constant 0 : i32
    %c0_i32_0 = arith.constant 0 : i32
    %c0_i32_1 = arith.constant 0 : i32
    return %c0_i32, %c0_i32_0 : i32, i32
  }
  func.func @transform_11(%arg0: i32) -> (i32, i32) {
    %c0_i32 = arith.constant 0 : i32
    %c0_i32_0 = arith.constant 0 : i32
    %c0_i32_1 = arith.constant 0 : i32
    return %c0_i32, %c0_i32_0 : i32, i32
  }
  func.func @transform_12(%arg0: i32) -> (i32, i32) {
    %c0_i32 = arith.constant 0 : i32
    %c0_i32_0 = arith.constant 0 : i32
    %c0_i32_1 = arith.constant 0 : i32
    return %c0_i32, %c0_i32_0 : i32, i32
  }
  func.func @transform_13(%arg0: i32) -> (i32, i32) {
    %c0_i32 = arith.constant 0 : i32
    %c0_i32_0 = arith.constant 0 : i32
    %c0_i32_1 = arith.constant 0 : i32
    return %c0_i32, %c0_i32_0 : i32, i32
  }
  func.func @transform_14(%arg0: i32) -> (i32, i32) {
    %c0_i32 = arith.constant 0 : i32
    %c0_i32_0 = arith.constant 0 : i32
    %c0_i32_1 = arith.constant 0 : i32
    return %c0_i32, %c0_i32_0 : i32, i32
  }
  func.func @transform_15(%arg0: i32) -> (i32, i32) {
    %c0_i32 = arith.constant 0 : i32
    %c0_i32_0 = arith.constant 0 : i32
    %c0_i32_1 = arith.constant 0 : i32
    return %c0_i32, %c0_i32_0 : i32, i32
  }
  func.func @transform_16(%arg0: i32) -> (i32, i32) {
    %c0_i32 = arith.constant 0 : i32
    %c0_i32_0 = arith.constant 0 : i32
    %c0_i32_1 = arith.constant 0 : i32
    return %c0_i32, %c0_i32_0 : i32, i32
  }
  func.func @transform_17(%arg0: i32) -> (i32, i32) {
    %c0_i32 = arith.constant 0 : i32
    %c0_i32_0 = arith.constant 0 : i32
    return %arg0, %c0_i32 : i32, i32
  }
  func.func @transform_18(%arg0: i32) -> (i32, i32) {
    %c0_i32 = arith.constant 0 : i32
    %c0_i32_0 = arith.constant 0 : i32
    return %arg0, %c0_i32 : i32, i32
  }
}

</mosaic_0001>

<llo_original>
// kernel: tpu_custom_call.1
$region0: #{tpu_custom_call.1}
  #allocation0 [shape = 'u32[]', space=smem, size = 0x4, offset = 0x4, fixed_abs, tag = 'smem constant byte address 0x4 - core index']
  #allocation1 [shape = 'u32[144,128]{1,0:T(1,128)}', space=vmem, size = 0x12000, scoped, tag = 'internal scratch']
  %s0 = inlined_call_operand.hbm [shape: f32[8,16], index: 0, kind: input, shape index: {}]
  %s1 = inlined_call_operand.hbm [shape: f32[8,8], index: 1, kind: input, shape index: {}]
  %s2 = inlined_call_operand.hbm [shape: f32[8,128], index: 2, kind: input, shape index: {}]
  %s3 = inlined_call_operand.hbm [shape: bf16[16,256], index: 3, kind: input, shape index: {}]
  %s4 = inlined_call_operand.vmem [shape: bf16[8,256], index: 4, kind: input, shape index: {}]
  %s5 = inlined_call_operand.vmem [shape: f32[1,256], index: 5, kind: input, shape index: {}]
  %s6 = inlined_call_operand.hbm [shape: bf16[256,256], index: 6, kind: input, shape index: {}]
  %s7 = inlined_call_operand.vmem [shape: f32[1,256], index: 7, kind: input, shape index: {}]
  %s8 = inlined_call_operand.hbm [shape: bf16[256,256], index: 8, kind: input, shape index: {}]
  %s9 = inlined_call_operand.vmem [shape: f32[1,256], index: 9, kind: input, shape index: {}]
  %s10 = inlined_call_operand.vmem [shape: bf16[16,256], index: 10, kind: input, shape index: {}]
  %s11 = inlined_call_operand.hbm [shape: bf16[128,256], index: 11, kind: input, shape index: {}]
  %s12 = inlined_call_operand.vmem [shape: f32[1,256], index: 12, kind: input, shape index: {}]
  %s13 = inlined_call_operand.hbm [shape: bf16[256,256], index: 13, kind: input, shape index: {}]
  %s14 = inlined_call_operand.vmem [shape: f32[1,256], index: 14, kind: input, shape index: {}]
  %s15 = inlined_call_operand.hbm [shape: bf16[256,128], index: 15, kind: input, shape index: {}]
  %s16 = inlined_call_operand.vmem [shape: f32[1,128], index: 16, kind: input, shape index: {}]
  %s17 = inlined_call_operand.hbm [shape: f32[8,128], index: 17, kind: output, shape index: {0}]
  %s18 = inlined_call_operand.hbm [shape: f32[8,256], index: 18, kind: output, shape index: {1}]
  %19 = xla_tuple %s17, %s18
  %s20 = sld [smem:[#allocation0]]
  $region122: #{tpu_custom_call.1} parent=0
    _
  %s22 = ssub.s32 1, %s20
  %s23 = scalar_select 0, %s22, %s20
  $region1: #{tpu_custom_call.1} parent=0
    #allocation2 [shape = 'u8[4096]{0}', space=vmem, size = 0x1000, scoped, tag = 'input window, operand 0, single buffered']
    #allocation3 [shape = 's32[1]{0}', space=sflag, size = 0x4, scoped, tag = 'scoped memory for tpu_custom_call.1']
    #allocation4 [shape = 's32[1]{0}', space=sflag, size = 0x4, scoped, tag = 'scoped memory for tpu_custom_call.1']
    #allocation5 [shape = 'u8[4096]{0}', space=vmem, size = 0x1000, scoped, tag = 'input window, operand 1, single buffered']
    #allocation6 [shape = 's32[1]{0}', space=sflag, size = 0x4, scoped, tag = 'scoped memory for tpu_custom_call.1']
    #allocation7 [shape = 'u8[4096]{0}', space=vmem, size = 0x1000, scoped, tag = 'input window, operand 2, single buffered']
    #allocation8 [shape = 'u8[8192]{0}', space=vmem, size = 0x2000, scoped, tag = 'input window, operand 3, single buffered']
    #allocation9 [shape = 's32[1]{0}', space=sflag, size = 0x4, scoped, tag = 'scoped memory for tpu_custom_call.1']
    #allocation10 [shape = 'u8[131072]{0}', space=vmem, size = 0x20000, scoped, tag = 'input window, operand 6, single buffered']
    #allocation11 [shape = 'u8[131072]{0}', space=vmem, size = 0x20000, scoped, tag = 'input window, operand 8, single buffered']
    #allocation12 [shape = 's32[1]{0}', space=sflag, size = 0x4, scoped, tag = 'scoped memory for tpu_custom_call.1']
    #allocation13 [shape = 'u8[65536]{0}', space=vmem, size = 0x10000, scoped, tag = 'input window, operand 11, single buffered']
    #allocation14 [shape = 'u8[131072]{0}', space=vmem, size = 0x20000, scoped, tag = 'input window, operand 13, single buffered']
    #allocation15 [shape = 's32[1]{0}', space=sflag, size = 0x4, scoped, tag = 'scoped memory for tpu_custom_call.1']
    #allocation16 [shape = 'u8[65536]{0}', space=vmem, size = 0x10000, scoped, tag = 'input window, operand 15, single buffered']
    #allocation17 [shape = 'u8[4096]{0}', space=vmem, size = 0x1000, scoped, tag = 'output window, operand 0, single buffered']
    #allocation18 [shape = 'u8[8192]{0}', space=vmem, size = 0x2000, scoped, tag = 'output window, operand 1, single buffered']
    #allocation19 [shape = 's32[1]{0}', space=sflag, size = 0x4, scoped, tag = 'scoped memory for tpu_custom_call.1']
    %24 = vsyncpa [#allocation3], 0
    %25 = vsyncpa [#allocation6], 0
    %26 = vsyncpa [#allocation9], 0
    %27 = vsyncpa [#allocation12], 0
    %28 = vsyncpa [#allocation15], 0
    %29 = vsyncpa [#allocation4], 0
    %30 = vsyncpa [#allocation19], 0
    // Predicated region
    $region2: #{tpu_custom_call.1} parent=1 // pred_check
      _
    $region3: #{tpu_custom_call.1} parent=1 // pred_check_branch
      %32 = sbr.rel (0) target = $region5
    $region4: #{tpu_custom_call.1} parent=1 // pred_region
      %s34 = ssub.s32 128, 128
      %35 = vsyncadd [#allocation3], %s34
      %s37 = sshll.u32 [#allocation2], 4
      %s38 = int_to_ptr.vmem [resolvable:$true] %s37
      %40 = dma.hbm_to_vmem [thread:$0]  %s0, 128, %s38, [#allocation3]
    $region5: #{tpu_custom_call.1} parent=1 // pred_fallthru
      _
    // Predicated region
    $region6: #{tpu_custom_call.1} parent=1 // pred_check
      _
    $region7: #{tpu_custom_call.1} parent=1 // pred_check_branch
      %42 = sbr.rel (0) target = $region9
    $region8: #{tpu_custom_call.1} parent=1 // pred_region
      %s44 = ssub.s32 128, 128
      %45 = vsyncadd [#allocation6], %s44
      %s47 = sshll.u32 [#allocation5], 4
      %s48 = int_to_ptr.vmem [resolvable:$true] %s47
      %50 = dma.hbm_to_vmem [thread:$0]  %s1, 128, %s48, [#allocation6]
    $region9: #{tpu_custom_call.1} parent=1 // pred_fallthru
      _
    // Predicated region
    $region10: #{tpu_custom_call.1} parent=1 // pred_check
      _
    $region11: #{tpu_custom_call.1} parent=1 // pred_check_branch
      %52 = sbr.rel (0) target = $region13
    $region12: #{tpu_custom_call.1} parent=1 // pred_region
      %s54 = ssub.s32 128, 128
      %55 = vsyncadd [#allocation6], %s54
      %s57 = sshll.u32 [#allocation7], 4
      %s58 = int_to_ptr.vmem [resolvable:$true] %s57
      %60 = dma.hbm_to_vmem [thread:$0]  %s2, 128, %s58, [#allocation6]
    $region13: #{tpu_custom_call.1} parent=1 // pred_fallthru
      _
    // Predicated region
    $region14: #{tpu_custom_call.1} parent=1 // pred_check
      _
    $region15: #{tpu_custom_call.1} parent=1 // pred_check_branch
      %62 = sbr.rel (0) target = $region17
    $region16: #{tpu_custom_call.1} parent=1 // pred_region
      %s64 = ssub.s32 256, 256
      %65 = vsyncadd [#allocation9], %s64
      %s66 = sshll.u32 [#allocation8], 4
      %s67 = int_to_ptr.vmem [resolvable:$true] %s66
      %72 = dma.hbm_to_vmem [thread:$0]  %s3, 256, %s67, [#allocation9], 128, 128, 8
    $region17: #{tpu_custom_call.1} parent=1 // pred_fallthru
      _
    // Predicated region
    $region18: #{tpu_custom_call.1} parent=1 // pred_check
      _
    $region19: #{tpu_custom_call.1} parent=1 // pred_check_branch
      %74 = sbr.rel (0) target = $region21
    $region20: #{tpu_custom_call.1} parent=1 // pred_region
      _
    $region21: #{tpu_custom_call.1} parent=1 // pred_fallthru
      _
    // Predicated region
    $region22: #{tpu_custom_call.1} parent=1 // pred_check
      _
    $region23: #{tpu_custom_call.1} parent=1 // pred_check_branch
      %76 = sbr.rel (0) target = $region25
    $region24: #{tpu_custom_call.1} parent=1 // pred_region
      _
    $region25: #{tpu_custom_call.1} parent=1 // pred_fallthru
      _
    // Predicated region
    $region26: #{tpu_custom_call.1} parent=1 // pred_check
      _
    $region27: #{tpu_custom_call.1} parent=1 // pred_check_branch
      %78 = sbr.rel (0) target = $region29
    $region28: #{tpu_custom_call.1} parent=1 // pred_region
      %s80 = ssub.s32 4096, 4096
      %81 = vsyncadd [#allocation9], %s80
      %s82 = sshll.u32 [#allocation10], 4
      %s83 = int_to_ptr.vmem [resolvable:$true] %s82
      %88 = dma.hbm_to_vmem [thread:$0]  %s6, 4096, %s83, [#allocation9], 128, 128, 8
    $region29: #{tpu_custom_call.1} parent=1 // pred_fallthru
      _
    // Predicated region
    $region30: #{tpu_custom_call.1} parent=1 // pred_check
      _
    $region31: #{tpu_custom_call.1} parent=1 // pred_check_branch
      %90 = sbr.rel (0) target = $region33
    $region32: #{tpu_custom_call.1} parent=1 // pred_region
      _
    $region33: #{tpu_custom_call.1} parent=1 // pred_fallthru
      _
    // Predicated region
    $region34: #{tpu_custom_call.1} parent=1 // pred_check
      _
    $region35: #{tpu_custom_call.1} parent=1 // pred_check_branch
      %92 = sbr.rel (0) target = $region37
    $region36: #{tpu_custom_call.1} parent=1 // pred_region
      %s94 = ssub.s32 4096, 4096
      %95 = vsyncadd [#allocation12], %s94
      %s96 = sshll.u32 [#allocation11], 4
      %s97 = int_to_ptr.vmem [resolvable:$true] %s96
      %102 = dma.hbm_to_vmem [thread:$0]  %s8, 4096, %s97, [#allocation12], 128, 128, 8
    $region37: #{tpu_custom_call.1} parent=1 // pred_fallthru
      _
    // Predicated region
    $region38: #{tpu_custom_call.1} parent=1 // pred_check
      _
    $region39: #{tpu_custom_call.1} parent=1 // pred_check_branch
      %104 = sbr.rel (0) target = $region41
    $region40: #{tpu_custom_call.1} parent=1 // pred_region
      _
    $region41: #{tpu_custom_call.1} parent=1 // pred_fallthru
      _
    // Predicated region
    $region42: #{tpu_custom_call.1} parent=1 // pred_check
      _
    $region43: #{tpu_custom_call.1} parent=1 // pred_check_branch
      %106 = sbr.rel (0) target = $region45
    $region44: #{tpu_custom_call.1} parent=1 // pred_region
      _
    $region45: #{tpu_custom_call.1} parent=1 // pred_fallthru
      _
    // Predicated region
    $region46: #{tpu_custom_call.1} parent=1 // pred_check
      _
    $region47: #{tpu_custom_call.1} parent=1 // pred_check_branch
      %108 = sbr.rel (0) target = $region49
    $region48: #{tpu_custom_call.1} parent=1 // pred_region
      %s110 = ssub.s32 2048, 2048
      %111 = vsyncadd [#allocation12], %s110
      %s112 = sshll.u32 [#allocation13], 4
      %s113 = int_to_ptr.vmem [resolvable:$true] %s112
      %118 = dma.hbm_to_vmem [thread:$0]  %s11, 2048, %s113, [#allocation12], 128, 128, 8
    $region49: #{tpu_custom_call.1} parent=1 // pred_fallthru
      _
    // Predicated region
    $region50: #{tpu_custom_call.1} parent=1 // pred_check
      _
    $region51: #{tpu_custom_call.1} parent=1 // pred_check_branch
      %120 = sbr.rel (0) target = $region53
    $region52: #{tpu_custom_call.1} parent=1 // pred_region
      _
    $region53: #{tpu_custom_call.1} parent=1 // pred_fallthru
      _
    // Predicated region
    $region54: #{tpu_custom_call.1} parent=1 // pred_check
      _
    $region55: #{tpu_custom_call.1} parent=1 // pred_check_branch
      %122 = sbr.rel (0) target = $region57
    $region56: #{tpu_custom_call.1} parent=1 // pred_region
      %s124 = ssub.s32 4096, 4096
      %125 = vsyncadd [#allocation15], %s124
      %s126 = sshll.u32 [#allocation14], 4
      %s127 = int_to_ptr.vmem [resolvable:$true] %s126
      %132 = dma.hbm_to_vmem [thread:$0]  %s13, 4096, %s127, [#allocation15], 128, 128, 8
    $region57: #{tpu_custom_call.1} parent=1 // pred_fallthru
      _
    // Predicated region
    $region58: #{tpu_custom_call.1} parent=1 // pred_check
      _
    $region59: #{tpu_custom_call.1} parent=1 // pred_check_branch
      %134 = sbr.rel (0) target = $region61
    $region60: #{tpu_custom_call.1} parent=1 // pred_region
      _
    $region61: #{tpu_custom_call.1} parent=1 // pred_fallthru
      _
    // Predicated region
    $region62: #{tpu_custom_call.1} parent=1 // pred_check
      _
    $region63: #{tpu_custom_call.1} parent=1 // pred_check_branch
      %136 = sbr.rel (0) target = $region65
    $region64: #{tpu_custom_call.1} parent=1 // pred_region
      %s138 = ssub.s32 2048, 2048
      %139 = vsyncadd [#allocation15], %s138
      %s140 = sshll.u32 [#allocation16], 4
      %s141 = int_to_ptr.vmem [resolvable:$true] %s140
      %146 = dma.hbm_to_vmem [thread:$0]  %s15, 2048, %s141, [#allocation15], 64, 64, 4
    $region65: #{tpu_custom_call.1} parent=1 // pred_fallthru
      _
    // Predicated region
    $region66: #{tpu_custom_call.1} parent=1 // pred_check
      _
    $region67: #{tpu_custom_call.1} parent=1 // pred_check_branch
      %148 = sbr.rel (0) target = $region69
    $region68: #{tpu_custom_call.1} parent=1 // pred_region
      _
    $region69: #{tpu_custom_call.1} parent=1 // pred_fallthru
      _
    // Predicated region
    $region70: #{tpu_custom_call.1} parent=1 // pred_check
      _
    $region71: #{tpu_custom_call.1} parent=1 // pred_check_branch
      %150 = sbr.rel (0) target = $region73
    $region72: #{tpu_custom_call.1} parent=1 // pred_region
      %151 = dma.done [#allocation3], 128
    $region73: #{tpu_custom_call.1} parent=1 // pred_fallthru
      _
    // Predicated region
    $region74: #{tpu_custom_call.1} parent=1 // pred_check
      _
    $region75: #{tpu_custom_call.1} parent=1 // pred_check_branch
      %153 = sbr.rel (0) target = $region77
    $region76: #{tpu_custom_call.1} parent=1 // pred_region
      %154 = dma.done [#allocation6], 128
    $region77: #{tpu_custom_call.1} parent=1 // pred_fallthru
      _
    // Predicated region
    $region78: #{tpu_custom_call.1} parent=1 // pred_check
      _
    $region79: #{tpu_custom_call.1} parent=1 // pred_check_branch
      %156 = sbr.rel (0) target = $region81
    $region80: #{tpu_custom_call.1} parent=1 // pred_region
      %157 = dma.done [#allocation6], 128
    $region81: #{tpu_custom_call.1} parent=1 // pred_fallthru
      _
    // Predicated region
    $region82: #{tpu_custom_call.1} parent=1 // pred_check
      _
    $region83: #{tpu_custom_call.1} parent=1 // pred_check_branch
      %159 = sbr.rel (0) target = $region85
    $region84: #{tpu_custom_call.1} parent=1 // pred_region
      %160 = dma.done [#allocation9], 256
    $region85: #{tpu_custom_call.1} parent=1 // pred_fallthru
      _
    // Predicated region
    $region86: #{tpu_custom_call.1} parent=1 // pred_check
      _
    $region87: #{tpu_custom_call.1} parent=1 // pred_check_branch
      %162 = sbr.rel (0) target = $region89
    $region88: #{tpu_custom_call.1} parent=1 // pred_region
      %163 = dma.done [#allocation9], 4096
    $region89: #{tpu_custom_call.1} parent=1 // pred_fallthru
      _
    // Predicated region
    $region90: #{tpu_custom_call.1} parent=1 // pred_check
      _
    $region91: #{tpu_custom_call.1} parent=1 // pred_check_branch
      %165 = sbr.rel (0) target = $region93
    $region92: #{tpu_custom_call.1} parent=1 // pred_region
      %166 = dma.done [#allocation12], 4096
    $region93: #{tpu_custom_call.1} parent=1 // pred_fallthru
      _
    // Predicated region
    $region94: #{tpu_custom_call.1} parent=1 // pred_check
      _
    $region95: #{tpu_custom_call.1} parent=1 // pred_check_branch
      %168 = sbr.rel (0) target = $region97
    $region96: #{tpu_custom_call.1} parent=1 // pred_region
      %169 = dma.done [#allocation12], 2048
    $region97: #{tpu_custom_call.1} parent=1 // pred_fallthru
      _
    // Predicated region
    $region98: #{tpu_custom_call.1} parent=1 // pred_check
      _
    $region99: #{tpu_custom_call.1} parent=1 // pred_check_branch
      %171 = sbr.rel (0) target = $region101
    $region100: #{tpu_custom_call.1} parent=1 // pred_region
      %172 = dma.done [#allocation15], 4096
    $region101: #{tpu_custom_call.1} parent=1 // pred_fallthru
      _
    // Predicated region
    $region102: #{tpu_custom_call.1} parent=1 // pred_check
      _
    $region103: #{tpu_custom_call.1} parent=1 // pred_check_branch
      %174 = sbr.rel (0) target = $region105
    $region104: #{tpu_custom_call.1} parent=1 // pred_region
      %175 = dma.done [#allocation15], 2048
    $region105: #{tpu_custom_call.1} parent=1 // pred_fallthru
      _
    %v177 = vld [vmem:[#allocation2] sm:$0xff]
    %v178 = vld [vmem:[#allocation5] sm:$0xff]
    %v179 = vpack.c.bf16 %v177, %v177
    %v180 = vpack.c.bf16 %v178, %v178
    %v181 = vld [vmem:[#allocation8] sm:$0xff]
    %v182 = vld [vmem:[#allocation8 + $0x8] sm:$0xff]
    %v183 = vld [vmem:[%s4] sm:$0xff]
    %v185 = vunpack.c.l.b16 %v183
    %v186 = vunpack.c.h.b16 %v183
    %v187 = vpack.c.b16 %v185, %v185
    %v188 = vpack.c.b16 %v186, %v186
    %vm189 = vcmask 64512
    %v191 = vsel %vm189, %v180, 0
    %vm193 = vcmask 1043456
    %v195 = vsel %vm193, %v187, 0
    %v198 = vsel %vm193, %v188, 0
    %200 = vmatprep.subr.bf16.mxu0 %v198
    %201 = vmatpush1.bf16.msra.mxu0 %v195
    %202 = vmatprep.subr.bf16.mxu0 0
    %203 = vmatpush1.bf16.msra.mxu0 0
    %204 = vmatprep.subr.bf16.mxu0 0
    %205 = vmatpush1.bf16.msra.mxu0 0
    %206 = vmatprep.subr.bf16.mxu0 0
    %207 = vmatpush1.bf16.msra.mxu0 0
    %208 = vmatprep.subr.bf16.mxu0 0
    %209 = vmatpush1.bf16.msra.mxu0 0
    %210 = vmatprep.subr.bf16.mxu0 0
    %211 = vmatpush1.bf16.msra.mxu0 0
    %212 = vmatprep.subr.bf16.mxu0 0
    %213 = vmatpush1.bf16.msra.mxu0 0
    %214 = vmatprep.subr.bf16.mxu0 0
    %215 = vmatpush1.bf16.msra.mxu0 0
    %216 = vmatprep.subr.bf16.mxu0 0
    %217 = vmatpush1.bf16.msra.mxu0 0
    %218 = vmatprep.subr.bf16.mxu0 0
    %219 = vmatpush1.bf16.msra.mxu0 0
    %220 = vmatprep.subr.bf16.mxu0 0
    %221 = vmatpush1.bf16.msra.mxu0 0
    %222 = vmatprep.subr.bf16.mxu0 0
    %223 = vmatpush1.bf16.msra.mxu0 0
    %224 = vmatprep.subr.bf16.mxu0 0
    %225 = vmatpush1.bf16.msra.mxu0 0
    %226 = vmatprep.subr.bf16.mxu0 0
    %227 = vmatpush1.bf16.msra.mxu0 0
    %228 = vmatprep.subr.bf16.mxu0 0
    %229 = vmatpush1.bf16.msra.mxu0 0
    %230 = vmatprep.subr.bf16.mxu0 0
    %231 = vmatpush1.bf16.msra.mxu0 0
    %232 = vmatprep.mubr.bf16.mxu0 0
    %233 = vmatmul.mubr.bf16.gmra.mrb[0].mxu0 %v191
    %v234 = vpop.f32.mrb[0].mxu0
    %v235 = vadd.f32 0.0, %v234
    %v236 = vpop.f32.mrb[0].mxu0
    %v237 = vadd.f32 0.0, %v236
    %v238 = vpop.f32.mrb[0].mxu0
    %v239 = vpop.f32.mrb[0].mxu0
    %240 = vdwg.mxu0
    %v243 = vunpack.c.l.b16 %v181
    %v244 = vunpack.c.h.b16 %v181
    %v245 = vunpack.c.l.b16 %v182
    %v246 = vunpack.c.h.b16 %v182
    %v247 = vpack.c.b16 %v245, %v243
    %v248 = vpack.c.b16 %v246, %v244
    %vm251 = vcmask 130048
    %v253 = vsel %vm251, %v179, 0
    %255 = vmatprep.subr.bf16.mxu0 %v248
    %256 = vmatpush1.bf16.msra.mxu0 %v247
    %257 = vmatprep.subr.bf16.mxu0 0
    %258 = vmatpush1.bf16.msra.mxu0 0
    %259 = vmatprep.subr.bf16.mxu0 0
    %260 = vmatpush1.bf16.msra.mxu0 0
    %261 = vmatprep.subr.bf16.mxu0 0
    %262 = vmatpush1.bf16.msra.mxu0 0
    %263 = vmatprep.subr.bf16.mxu0 0
    %264 = vmatpush1.bf16.msra.mxu0 0
    %265 = vmatprep.subr.bf16.mxu0 0
    %266 = vmatpush1.bf16.msra.mxu0 0
    %267 = vmatprep.subr.bf16.mxu0 0
    %268 = vmatpush1.bf16.msra.mxu0 0
    %269 = vmatprep.subr.bf16.mxu0 0
    %270 = vmatpush1.bf16.msra.mxu0 0
    %271 = vmatprep.subr.bf16.mxu0 0
    %272 = vmatpush1.bf16.msra.mxu0 0
    %273 = vmatprep.subr.bf16.mxu0 0
    %274 = vmatpush1.bf16.msra.mxu0 0
    %275 = vmatprep.subr.bf16.mxu0 0
    %276 = vmatpush1.bf16.msra.mxu0 0
    %277 = vmatprep.subr.bf16.mxu0 0
    %278 = vmatpush1.bf16.msra.mxu0 0
    %279 = vmatprep.subr.bf16.mxu0 0
    %280 = vmatpush1.bf16.msra.mxu0 0
    %281 = vmatprep.subr.bf16.mxu0 0
    %282 = vmatpush1.bf16.msra.mxu0 0
    %283 = vmatprep.subr.bf16.mxu0 0
    %284 = vmatpush1.bf16.msra.mxu0 0
    %285 = vmatprep.subr.bf16.mxu0 0
    %286 = vmatpush1.bf16.msra.mxu0 0
    %287 = vmatprep.mubr.bf16.mxu0 0
    %288 = vmatmul.mubr.bf16.gmra.mrb[0].mxu0 %v253
    %v289 = vpop.f32.mrb[0].mxu0
    %v290 = vadd.f32 %v235, %v289
    %v291 = vpop.f32.mrb[0].mxu0
    %v292 = vadd.f32 %v237, %v291
    %v293 = vpop.f32.mrb[0].mxu0
    %v294 = vpop.f32.mrb[0].mxu0
    %295 = vdwg.mxu0
    %v296 = vld [vmem:[%s5] sm:$0x3]
    %v298 = vlaneseq
    %v299 = vshrl.u32 %v298, 7
    %v300 = vsub.s32 0, %v299
    %v301 = vrot.slane %v296, %v300
    %v302 = vlaneseq
    %v303 = vshrl.u32 %v302, 7
    %v304 = vsub.s32 1, %v303
    %v305 = vrot.slane %v296, %v304
    %v308 = vadd.f32 %v290, %v301
    %v309 = vadd.f32 %v292, %v305
    %v310 = vmul.f32 %v308, 0.01
    %v311 = vmul.f32 %v309, 0.01
    %v312 = vmax.f32 %v308, %v310
    %v313 = vmax.f32 %v309, %v311
    %v314 = vpack.c.bf16 %v312, %v312
    %v315 = vpack.c.bf16 %v313, %v313
    %v316 = vld [vmem:[#allocation10] sm:$0xff]
    %v317 = vld [vmem:[#allocation10 + $0x8] sm:$0xff]
    %v318 = vld [vmem:[#allocation10 + $0x10] sm:$0xff]
    %v319 = vld [vmem:[#allocation10 + $0x18] sm:$0xff]
    %v320 = vld [vmem:[#allocation10 + $0x20] sm:$0xff]
    %v321 = vld [vmem:[#allocation10 + $0x28] sm:$0xff]
    %v322 = vld [vmem:[#allocation10 + $0x30] sm:$0xff]
    %v323 = vld [vmem:[#allocation10 + $0x38] sm:$0xff]
    %v324 = vld [vmem:[#allocation10 + $0x40] sm:$0xff]
    %v325 = vld [vmem:[#allocation10 + $0x48] sm:$0xff]
    %v326 = vld [vmem:[#allocation10 + $0x50] sm:$0xff]
    %v327 = vld [vmem:[#allocation10 + $0x58] sm:$0xff]
    %v328 = vld [vmem:[#allocation10 + $0x60] sm:$0xff]
    %v329 = vld [vmem:[#allocation10 + $0x68] sm:$0xff]
    %v330 = vld [vmem:[#allocation10 + $0x70] sm:$0xff]
    %v331 = vld [vmem:[#allocation10 + $0x78] sm:$0xff]
    %v332 = vld [vmem:[#allocation10 + $0x80] sm:$0xff]
    %v333 = vld [vmem:[#allocation10 + $0x88] sm:$0xff]
    %v334 = vld [vmem:[#allocation10 + $0x90] sm:$0xff]
    %v335 = vld [vmem:[#allocation10 + $0x98] sm:$0xff]
    %v336 = vld [vmem:[#allocation10 + $0xa0] sm:$0xff]
    %v337 = vld [vmem:[#allocation10 + $0xa8] sm:$0xff]
    %v338 = vld [vmem:[#allocation10 + $0xb0] sm:$0xff]
    %v339 = vld [vmem:[#allocation10 + $0xb8] sm:$0xff]
    %v340 = vld [vmem:[#allocation10 + $0xc0] sm:$0xff]
    %v341 = vld [vmem:[#allocation10 + $0xc8] sm:$0xff]
    %v342 = vld [vmem:[#allocation10 + $0xd0] sm:$0xff]
    %v343 = vld [vmem:[#allocation10 + $0xd8] sm:$0xff]
    %v344 = vld [vmem:[#allocation10 + $0xe0] sm:$0xff]
    %v345 = vld [vmem:[#allocation10 + $0xe8] sm:$0xff]
    %v346 = vld [vmem:[#allocation10 + $0xf0] sm:$0xff]
    %v347 = vld [vmem:[#allocation10 + $0xf8] sm:$0xff]
    %v348 = vld [vmem:[%s7] sm:$0x3]
    %v350 = vlaneseq
    %v351 = vshrl.u32 %v350, 7
    %v352 = vsub.s32 0, %v351
    %v353 = vrot.slane %v348, %v352
    %v354 = vlaneseq
    %v355 = vshrl.u32 %v354, 7
    %v356 = vsub.s32 1, %v355
    %v357 = vrot.slane %v348, %v356
    %v392 = vunpack.c.l.b16 %v316
    %v393 = vunpack.c.h.b16 %v316
    %v394 = vunpack.c.l.b16 %v317
    %v395 = vunpack.c.h.b16 %v317
    %v396 = vunpack.c.l.b16 %v318
    %v397 = vunpack.c.h.b16 %v318
    %v398 = vunpack.c.l.b16 %v319
    %v399 = vunpack.c.h.b16 %v319
    %v400 = vunpack.c.l.b16 %v320
    %v401 = vunpack.c.h.b16 %v320
    %v402 = vunpack.c.l.b16 %v321
    %v403 = vunpack.c.h.b16 %v321
    %v404 = vunpack.c.l.b16 %v322
    %v405 = vunpack.c.h.b16 %v322
    %v406 = vunpack.c.l.b16 %v323
    %v407 = vunpack.c.h.b16 %v323
    %v408 = vunpack.c.l.b16 %v324
    %v409 = vunpack.c.h.b16 %v324
    %v410 = vunpack.c.l.b16 %v325
    %v411 = vunpack.c.h.b16 %v325
    %v412 = vunpack.c.l.b16 %v326
    %v413 = vunpack.c.h.b16 %v326
    %v414 = vunpack.c.l.b16 %v327
    %v415 = vunpack.c.h.b16 %v327
    %v416 = vunpack.c.l.b16 %v328
    %v417 = vunpack.c.h.b16 %v328
    %v418 = vunpack.c.l.b16 %v329
    %v419 = vunpack.c.h.b16 %v329
    %v420 = vunpack.c.l.b16 %v330
    %v421 = vunpack.c.h.b16 %v330
    %v422 = vunpack.c.l.b16 %v331
    %v423 = vunpack.c.h.b16 %v331
    %v424 = vunpack.c.l.b16 %v332
    %v425 = vunpack.c.h.b16 %v332
    %v426 = vunpack.c.l.b16 %v333
    %v427 = vunpack.c.h.b16 %v333
    %v428 = vunpack.c.l.b16 %v334
    %v429 = vunpack.c.h.b16 %v334
    %v430 = vunpack.c.l.b16 %v335
    %v431 = vunpack.c.h.b16 %v335
    %v432 = vunpack.c.l.b16 %v336
    %v433 = vunpack.c.h.b16 %v336
    %v434 = vunpack.c.l.b16 %v337
    %v435 = vunpack.c.h.b16 %v337
    %v436 = vunpack.c.l.b16 %v338
    %v437 = vunpack.c.h.b16 %v338
    %v438 = vunpack.c.l.b16 %v339
    %v439 = vunpack.c.h.b16 %v339
    %v440 = vunpack.c.l.b16 %v340
    %v441 = vunpack.c.h.b16 %v340
    %v442 = vunpack.c.l.b16 %v341
    %v443 = vunpack.c.h.b16 %v341
    %v444 = vunpack.c.l.b16 %v342
    %v445 = vunpack.c.h.b16 %v342
    %v446 = vunpack.c.l.b16 %v343
    %v447 = vunpack.c.h.b16 %v343
    %v448 = vunpack.c.l.b16 %v344
    %v449 = vunpack.c.h.b16 %v344
    %v450 = vunpack.c.l.b16 %v345
    %v451 = vunpack.c.h.b16 %v345
    %v452 = vunpack.c.l.b16 %v346
    %v453 = vunpack.c.h.b16 %v346
    %v454 = vunpack.c.l.b16 %v347
    %v455 = vunpack.c.h.b16 %v347
    %v456 = vpack.c.b16 %v394, %v392
    %v457 = vpack.c.b16 %v395, %v393
    %v458 = vpack.c.b16 %v398, %v396
    %v459 = vpack.c.b16 %v399, %v397
    %v460 = vpack.c.b16 %v402, %v400
    %v461 = vpack.c.b16 %v403, %v401
    %v462 = vpack.c.b16 %v406, %v404
    %v463 = vpack.c.b16 %v407, %v405
    %v464 = vpack.c.b16 %v410, %v408
    %v465 = vpack.c.b16 %v411, %v409
    %v466 = vpack.c.b16 %v414, %v412
    %v467 = vpack.c.b16 %v415, %v413
    %v468 = vpack.c.b16 %v418, %v416
    %v469 = vpack.c.b16 %v419, %v417
    %v470 = vpack.c.b16 %v422, %v420
    %v471 = vpack.c.b16 %v423, %v421
    %v472 = vpack.c.b16 %v426, %v424
    %v473 = vpack.c.b16 %v427, %v425
    %v474 = vpack.c.b16 %v430, %v428
    %v475 = vpack.c.b16 %v431, %v429
    %v476 = vpack.c.b16 %v434, %v432
    %v477 = vpack.c.b16 %v435, %v433
    %v478 = vpack.c.b16 %v438, %v436
    %v479 = vpack.c.b16 %v439, %v437
    %v480 = vpack.c.b16 %v442, %v440
    %v481 = vpack.c.b16 %v443, %v441
    %v482 = vpack.c.b16 %v446, %v444
    %v483 = vpack.c.b16 %v447, %v445
    %v484 = vpack.c.b16 %v450, %v448
    %v485 = vpack.c.b16 %v451, %v449
    %v486 = vpack.c.b16 %v454, %v452
    %v487 = vpack.c.b16 %v455, %v453
    %520 = vmatprep.subr.bf16.mxu0 %v457
    %521 = vmatpush1.bf16.msra.mxu0 %v456
    %522 = vmatprep.subr.bf16.mxu0 %v459
    %523 = vmatpush1.bf16.msra.mxu0 %v458
    %524 = vmatprep.subr.bf16.mxu0 %v461
    %525 = vmatpush1.bf16.msra.mxu0 %v460
    %526 = vmatprep.subr.bf16.mxu0 %v463
    %527 = vmatpush1.bf16.msra.mxu0 %v462
    %528 = vmatprep.subr.bf16.mxu0 %v465
    %529 = vmatpush1.bf16.msra.mxu0 %v464
    %530 = vmatprep.subr.bf16.mxu0 %v467
    %531 = vmatpush1.bf16.msra.mxu0 %v466
    %532 = vmatprep.subr.bf16.mxu0 %v469
    %533 = vmatpush1.bf16.msra.mxu0 %v468
    %534 = vmatprep.subr.bf16.mxu0 %v471
    %535 = vmatpush1.bf16.msra.mxu0 %v470
    %536 = vmatprep.subr.bf16.mxu0 %v473
    %537 = vmatpush1.bf16.msra.mxu0 %v472
    %538 = vmatprep.subr.bf16.mxu0 %v475
    %539 = vmatpush1.bf16.msra.mxu0 %v474
    %540 = vmatprep.subr.bf16.mxu0 %v477
    %541 = vmatpush1.bf16.msra.mxu0 %v476
    %542 = vmatprep.subr.bf16.mxu0 %v479
    %543 = vmatpush1.bf16.msra.mxu0 %v478
    %544 = vmatprep.subr.bf16.mxu0 %v481
    %545 = vmatpush1.bf16.msra.mxu0 %v480
    %546 = vmatprep.subr.bf16.mxu0 %v483
    %547 = vmatpush1.bf16.msra.mxu0 %v482
    %548 = vmatprep.subr.bf16.mxu0 %v485
    %549 = vmatpush1.bf16.msra.mxu0 %v484
    %550 = vmatprep.subr.bf16.mxu0 %v487
    %551 = vmatpush1.bf16.msra.mxu0 %v486
    %552 = vmatprep.mubr.bf16.mxu0 %v315
    %553 = vmatmul.mubr.bf16.gmra.mrb[0].mxu0 %v314
    %v554 = vpop.f32.mrb[0].mxu0
    %v555 = vadd.f32 %v353, %v554
    %v556 = vpop.f32.mrb[0].mxu0
    %v557 = vadd.f32 %v357, %v556
    %v558 = vpop.f32.mrb[0].mxu0
    %v559 = vpop.f32.mrb[0].mxu0
    %560 = vdwg.mxu0
    %v561 = vmul.f32 %v555, 0.01
    %v562 = vmul.f32 %v557, 0.01
    %v563 = vmax.f32 %v555, %v561
    %v564 = vmax.f32 %v557, %v562
    %v565 = vpack.c.bf16 %v563, %v563
    %v566 = vpack.c.bf16 %v564, %v564
    %v567 = vld [vmem:[#allocation11] sm:$0xff]
    %v568 = vld [vmem:[#allocation11 + $0x8] sm:$0xff]
    %v569 = vld [vmem:[#allocation11 + $0x10] sm:$0xff]
    %v570 = vld [vmem:[#allocation11 + $0x18] sm:$0xff]
    %v571 = vld [vmem:[#allocation11 + $0x20] sm:$0xff]
    %v572 = vld [vmem:[#allocation11 + $0x28] sm:$0xff]
    %v573 = vld [vmem:[#allocation11 + $0x30] sm:$0xff]
    %v574 = vld [vmem:[#allocation11 + $0x38] sm:$0xff]
    %v575 = vld [vmem:[#allocation11 + $0x40] sm:$0xff]
    %v576 = vld [vmem:[#allocation11 + $0x48] sm:$0xff]
    %v577 = vld [vmem:[#allocation11 + $0x50] sm:$0xff]
    %v578 = vld [vmem:[#allocation11 + $0x58] sm:$0xff]
    %v579 = vld [vmem:[#allocation11 + $0x60] sm:$0xff]
    %v580 = vld [vmem:[#allocation11 + $0x68] sm:$0xff]
    %v581 = vld [vmem:[#allocation11 + $0x70] sm:$0xff]
    %v582 = vld [vmem:[#allocation11 + $0x78] sm:$0xff]
    %v583 = vld [vmem:[#allocation11 + $0x80] sm:$0xff]
    %v584 = vld [vmem:[#allocation11 + $0x88] sm:$0xff]
    %v585 = vld [vmem:[#allocation11 + $0x90] sm:$0xff]
    %v586 = vld [vmem:[#allocation11 + $0x98] sm:$0xff]
    %v587 = vld [vmem:[#allocation11 + $0xa0] sm:$0xff]
    %v588 = vld [vmem:[#allocation11 + $0xa8] sm:$0xff]
    %v589 = vld [vmem:[#allocation11 + $0xb0] sm:$0xff]
    %v590 = vld [vmem:[#allocation11 + $0xb8] sm:$0xff]
    %v591 = vld [vmem:[#allocation11 + $0xc0] sm:$0xff]
    %v592 = vld [vmem:[#allocation11 + $0xc8] sm:$0xff]
    %v593 = vld [vmem:[#allocation11 + $0xd0] sm:$0xff]
    %v594 = vld [vmem:[#allocation11 + $0xd8] sm:$0xff]
    %v595 = vld [vmem:[#allocation11 + $0xe0] sm:$0xff]
    %v596 = vld [vmem:[#allocation11 + $0xe8] sm:$0xff]
    %v597 = vld [vmem:[#allocation11 + $0xf0] sm:$0xff]
    %v598 = vld [vmem:[#allocation11 + $0xf8] sm:$0xff]
    %v599 = vld [vmem:[%s9] sm:$0x3]
    %v601 = vlaneseq
    %v602 = vshrl.u32 %v601, 7
    %v603 = vsub.s32 0, %v602
    %v604 = vrot.slane %v599, %v603
    %v605 = vlaneseq
    %v606 = vshrl.u32 %v605, 7
    %v607 = vsub.s32 1, %v606
    %v608 = vrot.slane %v599, %v607
    %v643 = vunpack.c.l.b16 %v567
    %v644 = vunpack.c.h.b16 %v567
    %v645 = vunpack.c.l.b16 %v568
    %v646 = vunpack.c.h.b16 %v568
    %v647 = vunpack.c.l.b16 %v569
    %v648 = vunpack.c.h.b16 %v569
    %v649 = vunpack.c.l.b16 %v570
    %v650 = vunpack.c.h.b16 %v570
    %v651 = vunpack.c.l.b16 %v571
    %v652 = vunpack.c.h.b16 %v571
    %v653 = vunpack.c.l.b16 %v572
    %v654 = vunpack.c.h.b16 %v572
    %v655 = vunpack.c.l.b16 %v573
    %v656 = vunpack.c.h.b16 %v573
    %v657 = vunpack.c.l.b16 %v574
    %v658 = vunpack.c.h.b16 %v574
    %v659 = vunpack.c.l.b16 %v575
    %v660 = vunpack.c.h.b16 %v575
    %v661 = vunpack.c.l.b16 %v576
    %v662 = vunpack.c.h.b16 %v576
    %v663 = vunpack.c.l.b16 %v577
    %v664 = vunpack.c.h.b16 %v577
    %v665 = vunpack.c.l.b16 %v578
    %v666 = vunpack.c.h.b16 %v578
    %v667 = vunpack.c.l.b16 %v579
    %v668 = vunpack.c.h.b16 %v579
    %v669 = vunpack.c.l.b16 %v580
    %v670 = vunpack.c.h.b16 %v580
    %v671 = vunpack.c.l.b16 %v581
    %v672 = vunpack.c.h.b16 %v581
    %v673 = vunpack.c.l.b16 %v582
    %v674 = vunpack.c.h.b16 %v582
    %v675 = vunpack.c.l.b16 %v583
    %v676 = vunpack.c.h.b16 %v583
    %v677 = vunpack.c.l.b16 %v584
    %v678 = vunpack.c.h.b16 %v584
    %v679 = vunpack.c.l.b16 %v585
    %v680 = vunpack.c.h.b16 %v585
    %v681 = vunpack.c.l.b16 %v586
    %v682 = vunpack.c.h.b16 %v586
    %v683 = vunpack.c.l.b16 %v587
    %v684 = vunpack.c.h.b16 %v587
    %v685 = vunpack.c.l.b16 %v588
    %v686 = vunpack.c.h.b16 %v588
    %v687 = vunpack.c.l.b16 %v589
    %v688 = vunpack.c.h.b16 %v589
    %v689 = vunpack.c.l.b16 %v590
    %v690 = vunpack.c.h.b16 %v590
    %v691 = vunpack.c.l.b16 %v591
    %v692 = vunpack.c.h.b16 %v591
    %v693 = vunpack.c.l.b16 %v592
    %v694 = vunpack.c.h.b16 %v592
    %v695 = vunpack.c.l.b16 %v593
    %v696 = vunpack.c.h.b16 %v593
    %v697 = vunpack.c.l.b16 %v594
    %v698 = vunpack.c.h.b16 %v594
    %v699 = vunpack.c.l.b16 %v595
    %v700 = vunpack.c.h.b16 %v595
    %v701 = vunpack.c.l.b16 %v596
    %v702 = vunpack.c.h.b16 %v596
    %v703 = vunpack.c.l.b16 %v597
    %v704 = vunpack.c.h.b16 %v597
    %v705 = vunpack.c.l.b16 %v598
    %v706 = vunpack.c.h.b16 %v598
    %v707 = vpack.c.b16 %v645, %v643
    %v708 = vpack.c.b16 %v646, %v644
    %v709 = vpack.c.b16 %v649, %v647
    %v710 = vpack.c.b16 %v650, %v648
    %v711 = vpack.c.b16 %v653, %v651
    %v712 = vpack.c.b16 %v654, %v652
    %v713 = vpack.c.b16 %v657, %v655
    %v714 = vpack.c.b16 %v658, %v656
    %v715 = vpack.c.b16 %v661, %v659
    %v716 = vpack.c.b16 %v662, %v660
    %v717 = vpack.c.b16 %v665, %v663
    %v718 = vpack.c.b16 %v666, %v664
    %v719 = vpack.c.b16 %v669, %v667
    %v720 = vpack.c.b16 %v670, %v668
    %v721 = vpack.c.b16 %v673, %v671
    %v722 = vpack.c.b16 %v674, %v672
    %v723 = vpack.c.b16 %v677, %v675
    %v724 = vpack.c.b16 %v678, %v676
    %v725 = vpack.c.b16 %v681, %v679
    %v726 = vpack.c.b16 %v682, %v680
    %v727 = vpack.c.b16 %v685, %v683
    %v728 = vpack.c.b16 %v686, %v684
    %v729 = vpack.c.b16 %v689, %v687
    %v730 = vpack.c.b16 %v690, %v688
    %v731 = vpack.c.b16 %v693, %v691
    %v732 = vpack.c.b16 %v694, %v692
    %v733 = vpack.c.b16 %v697, %v695
    %v734 = vpack.c.b16 %v698, %v696
    %v735 = vpack.c.b16 %v701, %v699
    %v736 = vpack.c.b16 %v702, %v700
    %v737 = vpack.c.b16 %v705, %v703
    %v738 = vpack.c.b16 %v706, %v704
    %771 = vmatprep.subr.bf16.mxu0 %v708
    %772 = vmatpush1.bf16.msra.mxu0 %v707
    %773 = vmatprep.subr.bf16.mxu0 %v710
    %774 = vmatpush1.bf16.msra.mxu0 %v709
    %775 = vmatprep.subr.bf16.mxu0 %v712
    %776 = vmatpush1.bf16.msra.mxu0 %v711
    %777 = vmatprep.subr.bf16.mxu0 %v714
    %778 = vmatpush1.bf16.msra.mxu0 %v713
    %779 = vmatprep.subr.bf16.mxu0 %v716
    %780 = vmatpush1.bf16.msra.mxu0 %v715
    %781 = vmatprep.subr.bf16.mxu0 %v718
    %782 = vmatpush1.bf16.msra.mxu0 %v717
    %783 = vmatprep.subr.bf16.mxu0 %v720
    %784 = vmatpush1.bf16.msra.mxu0 %v719
    %785 = vmatprep.subr.bf16.mxu0 %v722
    %786 = vmatpush1.bf16.msra.mxu0 %v721
    %787 = vmatprep.subr.bf16.mxu0 %v724
    %788 = vmatpush1.bf16.msra.mxu0 %v723
    %789 = vmatprep.subr.bf16.mxu0 %v726
    %790 = vmatpush1.bf16.msra.mxu0 %v725
    %791 = vmatprep.subr.bf16.mxu0 %v728
    %792 = vmatpush1.bf16.msra.mxu0 %v727
    %793 = vmatprep.subr.bf16.mxu0 %v730
    %794 = vmatpush1.bf16.msra.mxu0 %v729
    %795 = vmatprep.subr.bf16.mxu0 %v732
    %796 = vmatpush1.bf16.msra.mxu0 %v731
    %797 = vmatprep.subr.bf16.mxu0 %v734
    %798 = vmatpush1.bf16.msra.mxu0 %v733
    %799 = vmatprep.subr.bf16.mxu0 %v736
    %800 = vmatpush1.bf16.msra.mxu0 %v735
    %801 = vmatprep.subr.bf16.mxu0 %v738
    %802 = vmatpush1.bf16.msra.mxu0 %v737
    %803 = vmatprep.mubr.bf16.mxu0 %v566
    %804 = vmatmul.mubr.bf16.gmra.mrb[0].mxu0 %v565
    %v805 = vpop.f32.mrb[0].mxu0
    %v806 = vadd.f32 %v604, %v805
    %v807 = vpop.f32.mrb[0].mxu0
    %v808 = vadd.f32 %v608, %v807
    %v809 = vpop.f32.mrb[0].mxu0
    %v810 = vpop.f32.mrb[0].mxu0
    %811 = vdwg.mxu0
    %v812 = vmax.f32 %v808, -5.0
    %v813 = vmin.f32 %v812, 5.0
    %v814 = vmul.f32 %v813, 1.442695
    %v815 = vpow.pop %v814
    %v816 = vld [vmem:[#allocation7] sm:$0xff]
    %v817 = vmul.f32 %v816, %v815
    %v818 = vadd.f32 %v806, %v817
    %v819 = vld [vmem:[%s10] sm:$0xff]
    %v820 = vld [vmem:[%s10 + $0x8] sm:$0xff]
    %v821 = vpack.c.bf16 %v818, %v818
    %v822 = vld [vmem:[#allocation13] sm:$0xff]
    %v823 = vld [vmem:[#allocation13 + $0x8] sm:$0xff]
    %v824 = vld [vmem:[#allocation13 + $0x10] sm:$0xff]
    %v825 = vld [vmem:[#allocation13 + $0x18] sm:$0xff]
    %v826 = vld [vmem:[#allocation13 + $0x20] sm:$0xff]
    %v827 = vld [vmem:[#allocation13 + $0x28] sm:$0xff]
    %v828 = vld [vmem:[#allocation13 + $0x30] sm:$0xff]
    %v829 = vld [vmem:[#allocation13 + $0x38] sm:$0xff]
    %v830 = vld [vmem:[#allocation13 + $0x40] sm:$0xff]
    %v831 = vld [vmem:[#allocation13 + $0x48] sm:$0xff]
    %v832 = vld [vmem:[#allocation13 + $0x50] sm:$0xff]
    %v833 = vld [vmem:[#allocation13 + $0x58] sm:$0xff]
    %v834 = vld [vmem:[#allocation13 + $0x60] sm:$0xff]
    %v835 = vld [vmem:[#allocation13 + $0x68] sm:$0xff]
    %v836 = vld [vmem:[#allocation13 + $0x70] sm:$0xff]
    %v837 = vld [vmem:[#allocation13 + $0x78] sm:$0xff]
    %v854 = vunpack.c.l.b16 %v822
    %v855 = vunpack.c.h.b16 %v822
    %v856 = vunpack.c.l.b16 %v823
    %v857 = vunpack.c.h.b16 %v823
    %v858 = vunpack.c.l.b16 %v824
    %v859 = vunpack.c.h.b16 %v824
    %v860 = vunpack.c.l.b16 %v825
    %v861 = vunpack.c.h.b16 %v825
    %v862 = vunpack.c.l.b16 %v826
    %v863 = vunpack.c.h.b16 %v826
    %v864 = vunpack.c.l.b16 %v827
    %v865 = vunpack.c.h.b16 %v827
    %v866 = vunpack.c.l.b16 %v828
    %v867 = vunpack.c.h.b16 %v828
    %v868 = vunpack.c.l.b16 %v829
    %v869 = vunpack.c.h.b16 %v829
    %v870 = vunpack.c.l.b16 %v830
    %v871 = vunpack.c.h.b16 %v830
    %v872 = vunpack.c.l.b16 %v831
    %v873 = vunpack.c.h.b16 %v831
    %v874 = vunpack.c.l.b16 %v832
    %v875 = vunpack.c.h.b16 %v832
    %v876 = vunpack.c.l.b16 %v833
    %v877 = vunpack.c.h.b16 %v833
    %v878 = vunpack.c.l.b16 %v834
    %v879 = vunpack.c.h.b16 %v834
    %v880 = vunpack.c.l.b16 %v835
    %v881 = vunpack.c.h.b16 %v835
    %v882 = vunpack.c.l.b16 %v836
    %v883 = vunpack.c.h.b16 %v836
    %v884 = vunpack.c.l.b16 %v837
    %v885 = vunpack.c.h.b16 %v837
    %v886 = vpack.c.b16 %v856, %v854
    %v887 = vpack.c.b16 %v857, %v855
    %v888 = vpack.c.b16 %v860, %v858
    %v889 = vpack.c.b16 %v861, %v859
    %v890 = vpack.c.b16 %v864, %v862
    %v891 = vpack.c.b16 %v865, %v863
    %v892 = vpack.c.b16 %v868, %v866
    %v893 = vpack.c.b16 %v869, %v867
    %v894 = vpack.c.b16 %v872, %v870
    %v895 = vpack.c.b16 %v873, %v871
    %v896 = vpack.c.b16 %v876, %v874
    %v897 = vpack.c.b16 %v877, %v875
    %v898 = vpack.c.b16 %v880, %v878
    %v899 = vpack.c.b16 %v881, %v879
    %v900 = vpack.c.b16 %v884, %v882
    %v901 = vpack.c.b16 %v885, %v883
    %918 = vmatprep.subr.bf16.mxu0 %v887
    %919 = vmatpush1.bf16.msra.mxu0 %v886
    %920 = vmatprep.subr.bf16.mxu0 %v889
    %921 = vmatpush1.bf16.msra.mxu0 %v888
    %922 = vmatprep.subr.bf16.mxu0 %v891
    %923 = vmatpush1.bf16.msra.mxu0 %v890
    %924 = vmatprep.subr.bf16.mxu0 %v893
    %925 = vmatpush1.bf16.msra.mxu0 %v892
    %926 = vmatprep.subr.bf16.mxu0 %v895
    %927 = vmatpush1.bf16.msra.mxu0 %v894
    %928 = vmatprep.subr.bf16.mxu0 %v897
    %929 = vmatpush1.bf16.msra.mxu0 %v896
    %930 = vmatprep.subr.bf16.mxu0 %v899
    %931 = vmatpush1.bf16.msra.mxu0 %v898
    %932 = vmatprep.subr.bf16.mxu0 %v901
    %933 = vmatpush1.bf16.msra.mxu0 %v900
    %934 = vmatprep.subr.bf16.mxu0 0
    %935 = vmatpush1.bf16.msra.mxu0 0
    %936 = vmatprep.subr.bf16.mxu0 0
    %937 = vmatpush1.bf16.msra.mxu0 0
    %938 = vmatprep.subr.bf16.mxu0 0
    %939 = vmatpush1.bf16.msra.mxu0 0
    %940 = vmatprep.subr.bf16.mxu0 0
    %941 = vmatpush1.bf16.msra.mxu0 0
    %942 = vmatprep.subr.bf16.mxu0 0
    %943 = vmatpush1.bf16.msra.mxu0 0
    %944 = vmatprep.subr.bf16.mxu0 0
    %945 = vmatpush1.bf16.msra.mxu0 0
    %946 = vmatprep.subr.bf16.mxu0 0
    %947 = vmatpush1.bf16.msra.mxu0 0
    %948 = vmatprep.subr.bf16.mxu0 0
    %949 = vmatpush1.bf16.msra.mxu0 0
    %950 = vmatprep.mubr.bf16.mxu0 0
    %951 = vmatmul.mubr.bf16.gmra.mrb[0].mxu0 %v821
    %v952 = vpop.f32.mrb[0].mxu0
    %v953 = vadd.f32 0.0, %v952
    %v954 = vpop.f32.mrb[0].mxu0
    %v955 = vadd.f32 0.0, %v954
    %v956 = vpop.f32.mrb[0].mxu0
    %v957 = vpop.f32.mrb[0].mxu0
    %958 = vdwg.mxu0
    %v961 = vunpack.c.l.b16 %v819
    %v962 = vunpack.c.h.b16 %v819
    %v963 = vunpack.c.l.b16 %v820
    %v964 = vunpack.c.h.b16 %v820
    %v965 = vpack.c.b16 %v963, %v961
    %v966 = vpack.c.b16 %v964, %v962
    %969 = vmatprep.subr.bf16.mxu0 %v966
    %970 = vmatpush1.bf16.msra.mxu0 %v965
    %971 = vmatprep.subr.bf16.mxu0 0
    %972 = vmatpush1.bf16.msra.mxu0 0
    %973 = vmatprep.subr.bf16.mxu0 0
    %974 = vmatpush1.bf16.msra.mxu0 0
    %975 = vmatprep.subr.bf16.mxu0 0
    %976 = vmatpush1.bf16.msra.mxu0 0
    %977 = vmatprep.subr.bf16.mxu0 0
    %978 = vmatpush1.bf16.msra.mxu0 0
    %979 = vmatprep.subr.bf16.mxu0 0
    %980 = vmatpush1.bf16.msra.mxu0 0
    %981 = vmatprep.subr.bf16.mxu0 0
    %982 = vmatpush1.bf16.msra.mxu0 0
    %983 = vmatprep.subr.bf16.mxu0 0
    %984 = vmatpush1.bf16.msra.mxu0 0
    %985 = vmatprep.subr.bf16.mxu0 0
    %986 = vmatpush1.bf16.msra.mxu0 0
    %987 = vmatprep.subr.bf16.mxu0 0
    %988 = vmatpush1.bf16.msra.mxu0 0
    %989 = vmatprep.subr.bf16.mxu0 0
    %990 = vmatpush1.bf16.msra.mxu0 0
    %991 = vmatprep.subr.bf16.mxu0 0
    %992 = vmatpush1.bf16.msra.mxu0 0
    %993 = vmatprep.subr.bf16.mxu0 0
    %994 = vmatpush1.bf16.msra.mxu0 0
    %995 = vmatprep.subr.bf16.mxu0 0
    %996 = vmatpush1.bf16.msra.mxu0 0
    %997 = vmatprep.subr.bf16.mxu0 0
    %998 = vmatpush1.bf16.msra.mxu0 0
    %999 = vmatprep.subr.bf16.mxu0 0
    %1000 = vmatpush1.bf16.msra.mxu0 0
    %1001 = vmatprep.mubr.bf16.mxu0 0
    %1002 = vmatmul.mubr.bf16.gmra.mrb[0].mxu0 %v253
    %v1003 = vpop.f32.mrb[0].mxu0
    %v1004 = vadd.f32 %v953, %v1003
    %v1005 = vpop.f32.mrb[0].mxu0
    %v1006 = vadd.f32 %v955, %v1005
    %v1007 = vpop.f32.mrb[0].mxu0
    %v1008 = vpop.f32.mrb[0].mxu0
    %1009 = vdwg.mxu0
    %v1010 = vld [vmem:[%s12] sm:$0x3]
    %v1012 = vlaneseq
    %v1013 = vshrl.u32 %v1012, 7
    %v1014 = vsub.s32 0, %v1013
    %v1015 = vrot.slane %v1010, %v1014
    %v1016 = vlaneseq
    %v1017 = vshrl.u32 %v1016, 7
    %v1018 = vsub.s32 1, %v1017
    %v1019 = vrot.slane %v1010, %v1018
    %v1022 = vadd.f32 %v1004, %v1015
    %v1023 = vadd.f32 %v1006, %v1019
    %v1024 = vmul.f32 %v1022, 0.01
    %v1025 = vmul.f32 %v1023, 0.01
    %v1026 = vmax.f32 %v1022, %v1024
    %v1027 = vmax.f32 %v1023, %v1025
    %v1028 = vpack.c.bf16 %v1026, %v1026
    %v1029 = vpack.c.bf16 %v1027, %v1027
    %v1030 = vld [vmem:[#allocation14] sm:$0xff]
    %v1031 = vld [vmem:[#allocation14 + $0x8] sm:$0xff]
    %v1032 = vld [vmem:[#allocation14 + $0x10] sm:$0xff]
    %v1033 = vld [vmem:[#allocation14 + $0x18] sm:$0xff]
    %v1034 = vld [vmem:[#allocation14 + $0x20] sm:$0xff]
    %v1035 = vld [vmem:[#allocation14 + $0x28] sm:$0xff]
    %v1036 = vld [vmem:[#allocation14 + $0x30] sm:$0xff]
    %v1037 = vld [vmem:[#allocation14 + $0x38] sm:$0xff]
    %v1038 = vld [vmem:[#allocation14 + $0x40] sm:$0xff]
    %v1039 = vld [vmem:[#allocation14 + $0x48] sm:$0xff]
    %v1040 = vld [vmem:[#allocation14 + $0x50] sm:$0xff]
    %v1041 = vld [vmem:[#allocation14 + $0x58] sm:$0xff]
    %v1042 = vld [vmem:[#allocation14 + $0x60] sm:$0xff]
    %v1043 = vld [vmem:[#allocation14 + $0x68] sm:$0xff]
    %v1044 = vld [vmem:[#allocation14 + $0x70] sm:$0xff]
    %v1045 = vld [vmem:[#allocation14 + $0x78] sm:$0xff]
    %v1046 = vld [vmem:[#allocation14 + $0x80] sm:$0xff]
    %v1047 = vld [vmem:[#allocation14 + $0x88] sm:$0xff]
    %v1048 = vld [vmem:[#allocation14 + $0x90] sm:$0xff]
    %v1049 = vld [vmem:[#allocation14 + $0x98] sm:$0xff]
    %v1050 = vld [vmem:[#allocation14 + $0xa0] sm:$0xff]
    %v1051 = vld [vmem:[#allocation14 + $0xa8] sm:$0xff]
    %v1052 = vld [vmem:[#allocation14 + $0xb0] sm:$0xff]
    %v1053 = vld [vmem:[#allocation14 + $0xb8] sm:$0xff]
    %v1054 = vld [vmem:[#allocation14 + $0xc0] sm:$0xff]
    %v1055 = vld [vmem:[#allocation14 + $0xc8] sm:$0xff]
    %v1056 = vld [vmem:[#allocation14 + $0xd0] sm:$0xff]
    %v1057 = vld [vmem:[#allocation14 + $0xd8] sm:$0xff]
    %v1058 = vld [vmem:[#allocation14 + $0xe0] sm:$0xff]
    %v1059 = vld [vmem:[#allocation14 + $0xe8] sm:$0xff]
    %v1060 = vld [vmem:[#allocation14 + $0xf0] sm:$0xff]
    %v1061 = vld [vmem:[#allocation14 + $0xf8] sm:$0xff]
    %v1062 = vld [vmem:[%s14] sm:$0x3]
    %v1064 = vlaneseq
    %v1065 = vshrl.u32 %v1064, 7
    %v1066 = vsub.s32 0, %v1065
    %v1067 = vrot.slane %v1062, %v1066
    %v1068 = vlaneseq
    %v1069 = vshrl.u32 %v1068, 7
    %v1070 = vsub.s32 1, %v1069
    %v1071 = vrot.slane %v1062, %v1070
    %v1106 = vunpack.c.l.b16 %v1030
    %v1107 = vunpack.c.h.b16 %v1030
    %v1108 = vunpack.c.l.b16 %v1031
    %v1109 = vunpack.c.h.b16 %v1031
    %v1110 = vunpack.c.l.b16 %v1032
    %v1111 = vunpack.c.h.b16 %v1032
    %v1112 = vunpack.c.l.b16 %v1033
    %v1113 = vunpack.c.h.b16 %v1033
    %v1114 = vunpack.c.l.b16 %v1034
    %v1115 = vunpack.c.h.b16 %v1034
    %v1116 = vunpack.c.l.b16 %v1035
    %v1117 = vunpack.c.h.b16 %v1035
    %v1118 = vunpack.c.l.b16 %v1036
    %v1119 = vunpack.c.h.b16 %v1036
    %v1120 = vunpack.c.l.b16 %v1037
    %v1121 = vunpack.c.h.b16 %v1037
    %v1122 = vunpack.c.l.b16 %v1038
    %v1123 = vunpack.c.h.b16 %v1038
    %v1124 = vunpack.c.l.b16 %v1039
    %v1125 = vunpack.c.h.b16 %v1039
    %v1126 = vunpack.c.l.b16 %v1040
    %v1127 = vunpack.c.h.b16 %v1040
    %v1128 = vunpack.c.l.b16 %v1041
    %v1129 = vunpack.c.h.b16 %v1041
    %v1130 = vunpack.c.l.b16 %v1042
    %v1131 = vunpack.c.h.b16 %v1042
    %v1132 = vunpack.c.l.b16 %v1043
    %v1133 = vunpack.c.h.b16 %v1043
    %v1134 = vunpack.c.l.b16 %v1044
    %v1135 = vunpack.c.h.b16 %v1044
    %v1136 = vunpack.c.l.b16 %v1045
    %v1137 = vunpack.c.h.b16 %v1045
    %v1138 = vunpack.c.l.b16 %v1046
    %v1139 = vunpack.c.h.b16 %v1046
    %v1140 = vunpack.c.l.b16 %v1047
    %v1141 = vunpack.c.h.b16 %v1047
    %v1142 = vunpack.c.l.b16 %v1048
    %v1143 = vunpack.c.h.b16 %v1048
    %v1144 = vunpack.c.l.b16 %v1049
    %v1145 = vunpack.c.h.b16 %v1049
    %v1146 = vunpack.c.l.b16 %v1050
    %v1147 = vunpack.c.h.b16 %v1050
    %v1148 = vunpack.c.l.b16 %v1051
    %v1149 = vunpack.c.h.b16 %v1051
    %v1150 = vunpack.c.l.b16 %v1052
    %v1151 = vunpack.c.h.b16 %v1052
    %v1152 = vunpack.c.l.b16 %v1053
    %v1153 = vunpack.c.h.b16 %v1053
    %v1154 = vunpack.c.l.b16 %v1054
    %v1155 = vunpack.c.h.b16 %v1054
    %v1156 = vunpack.c.l.b16 %v1055
    %v1157 = vunpack.c.h.b16 %v1055
    %v1158 = vunpack.c.l.b16 %v1056
    %v1159 = vunpack.c.h.b16 %v1056
    %v1160 = vunpack.c.l.b16 %v1057
    %v1161 = vunpack.c.h.b16 %v1057
    %v1162 = vunpack.c.l.b16 %v1058
    %v1163 = vunpack.c.h.b16 %v1058
    %v1164 = vunpack.c.l.b16 %v1059
    %v1165 = vunpack.c.h.b16 %v1059
    %v1166 = vunpack.c.l.b16 %v1060
    %v1167 = vunpack.c.h.b16 %v1060
    %v1168 = vunpack.c.l.b16 %v1061
    %v1169 = vunpack.c.h.b16 %v1061
    %v1170 = vpack.c.b16 %v1108, %v1106
    %v1171 = vpack.c.b16 %v1109, %v1107
    %v1172 = vpack.c.b16 %v1112, %v1110
    %v1173 = vpack.c.b16 %v1113, %v1111
    %v1174 = vpack.c.b16 %v1116, %v1114
    %v1175 = vpack.c.b16 %v1117, %v1115
    %v1176 = vpack.c.b16 %v1120, %v1118
    %v1177 = vpack.c.b16 %v1121, %v1119
    %v1178 = vpack.c.b16 %v1124, %v1122
    %v1179 = vpack.c.b16 %v1125, %v1123
    %v1180 = vpack.c.b16 %v1128, %v1126
    %v1181 = vpack.c.b16 %v1129, %v1127
    %v1182 = vpack.c.b16 %v1132, %v1130
    %v1183 = vpack.c.b16 %v1133, %v1131
    %v1184 = vpack.c.b16 %v1136, %v1134
    %v1185 = vpack.c.b16 %v1137, %v1135
    %v1186 = vpack.c.b16 %v1140, %v1138
    %v1187 = vpack.c.b16 %v1141, %v1139
    %v1188 = vpack.c.b16 %v1144, %v1142
    %v1189 = vpack.c.b16 %v1145, %v1143
    %v1190 = vpack.c.b16 %v1148, %v1146
    %v1191 = vpack.c.b16 %v1149, %v1147
    %v1192 = vpack.c.b16 %v1152, %v1150
    %v1193 = vpack.c.b16 %v1153, %v1151
    %v1194 = vpack.c.b16 %v1156, %v1154
    %v1195 = vpack.c.b16 %v1157, %v1155
    %v1196 = vpack.c.b16 %v1160, %v1158
    %v1197 = vpack.c.b16 %v1161, %v1159
    %v1198 = vpack.c.b16 %v1164, %v1162
    %v1199 = vpack.c.b16 %v1165, %v1163
    %v1200 = vpack.c.b16 %v1168, %v1166
    %v1201 = vpack.c.b16 %v1169, %v1167
    %1234 = vmatprep.subr.bf16.mxu0 %v1171
    %1235 = vmatpush1.bf16.msra.mxu0 %v1170
    %1236 = vmatprep.subr.bf16.mxu0 %v1173
    %1237 = vmatpush1.bf16.msra.mxu0 %v1172
    %1238 = vmatprep.subr.bf16.mxu0 %v1175
    %1239 = vmatpush1.bf16.msra.mxu0 %v1174
    %1240 = vmatprep.subr.bf16.mxu0 %v1177
    %1241 = vmatpush1.bf16.msra.mxu0 %v1176
    %1242 = vmatprep.subr.bf16.mxu0 %v1179
    %1243 = vmatpush1.bf16.msra.mxu0 %v1178
    %1244 = vmatprep.subr.bf16.mxu0 %v1181
    %1245 = vmatpush1.bf16.msra.mxu0 %v1180
    %1246 = vmatprep.subr.bf16.mxu0 %v1183
    %1247 = vmatpush1.bf16.msra.mxu0 %v1182
    %1248 = vmatprep.subr.bf16.mxu0 %v1185
    %1249 = vmatpush1.bf16.msra.mxu0 %v1184
    %1250 = vmatprep.subr.bf16.mxu0 %v1187
    %1251 = vmatpush1.bf16.msra.mxu0 %v1186
    %1252 = vmatprep.subr.bf16.mxu0 %v1189
    %1253 = vmatpush1.bf16.msra.mxu0 %v1188
    %1254 = vmatprep.subr.bf16.mxu0 %v1191
    %1255 = vmatpush1.bf16.msra.mxu0 %v1190
    %1256 = vmatprep.subr.bf16.mxu0 %v1193
    %1257 = vmatpush1.bf16.msra.mxu0 %v1192
    %1258 = vmatprep.subr.bf16.mxu0 %v1195
    %1259 = vmatpush1.bf16.msra.mxu0 %v1194
    %1260 = vmatprep.subr.bf16.mxu0 %v1197
    %1261 = vmatpush1.bf16.msra.mxu0 %v1196
    %1262 = vmatprep.subr.bf16.mxu0 %v1199
    %1263 = vmatpush1.bf16.msra.mxu0 %v1198
    %1264 = vmatprep.subr.bf16.mxu0 %v1201
    %1265 = vmatpush1.bf16.msra.mxu0 %v1200
    %1266 = vmatprep.mubr.bf16.mxu0 %v1029
    %1267 = vmatmul.mubr.bf16.gmra.mrb[0].mxu0 %v1028
    %v1268 = vpop.f32.mrb[0].mxu0
    %v1269 = vadd.f32 %v1067, %v1268
    %v1270 = vpop.f32.mrb[0].mxu0
    %v1271 = vadd.f32 %v1071, %v1270
    %v1272 = vpop.f32.mrb[0].mxu0
    %v1273 = vpop.f32.mrb[0].mxu0
    %1274 = vdwg.mxu0
    %v1275 = vmul.f32 %v1269, 0.01
    %v1276 = vmul.f32 %v1271, 0.01
    %v1277 = vmax.f32 %v1269, %v1275
    %v1278 = vmax.f32 %v1271, %v1276
    %v1279 = vpack.c.bf16 %v1277, %v1277
    %v1280 = vpack.c.bf16 %v1278, %v1278
    %v1281 = vld [vmem:[#allocation16] sm:$0xf]
    %v1282 = vld [vmem:[#allocation16 + $0x4] sm:$0xf]
    %v1283 = vld [vmem:[#allocation16 + $0x8] sm:$0xf]
    %v1284 = vld [vmem:[#allocation16 + $0xc] sm:$0xf]
    %v1285 = vld [vmem:[#allocation16 + $0x10] sm:$0xf]
    %v1286 = vld [vmem:[#allocation16 + $0x14] sm:$0xf]
    %v1287 = vld [vmem:[#allocation16 + $0x18] sm:$0xf]
    %v1288 = vld [vmem:[#allocation16 + $0x1c] sm:$0xf]
    %v1289 = vld [vmem:[#allocation16 + $0x20] sm:$0xf]
    %v1290 = vld [vmem:[#allocation16 + $0x24] sm:$0xf]
    %v1291 = vld [vmem:[#allocation16 + $0x28] sm:$0xf]
    %v1292 = vld [vmem:[#allocation16 + $0x2c] sm:$0xf]
    %v1293 = vld [vmem:[#allocation16 + $0x30] sm:$0xf]
    %v1294 = vld [vmem:[#allocation16 + $0x34] sm:$0xf]
    %v1295 = vld [vmem:[#allocation16 + $0x38] sm:$0xf]
    %v1296 = vld [vmem:[#allocation16 + $0x3c] sm:$0xf]
    %v1297 = vld [vmem:[#allocation16 + $0x40] sm:$0xf]
    %v1298 = vld [vmem:[#allocation16 + $0x44] sm:$0xf]
    %v1299 = vld [vmem:[#allocation16 + $0x48] sm:$0xf]
    %v1300 = vld [vmem:[#allocation16 + $0x4c] sm:$0xf]
    %v1301 = vld [vmem:[#allocation16 + $0x50] sm:$0xf]
    %v1302 = vld [vmem:[#allocation16 + $0x54] sm:$0xf]
    %v1303 = vld [vmem:[#allocation16 + $0x58] sm:$0xf]
    %v1304 = vld [vmem:[#allocation16 + $0x5c] sm:$0xf]
    %v1305 = vld [vmem:[#allocation16 + $0x60] sm:$0xf]
    %v1306 = vld [vmem:[#allocation16 + $0x64] sm:$0xf]
    %v1307 = vld [vmem:[#allocation16 + $0x68] sm:$0xf]
    %v1308 = vld [vmem:[#allocation16 + $0x6c] sm:$0xf]
    %v1309 = vld [vmem:[#allocation16 + $0x70] sm:$0xf]
    %v1310 = vld [vmem:[#allocation16 + $0x74] sm:$0xf]
    %v1311 = vld [vmem:[#allocation16 + $0x78] sm:$0xf]
    %v1312 = vld [vmem:[#allocation16 + $0x7c] sm:$0xf]
    %v1313 = vld [vmem:[%s16] sm:$0x1]
    %v1315 = vlaneseq
    %v1316 = vshrl.u32 %v1315, 7
    %v1317 = vsub.s32 0, %v1316
    %v1318 = vrot.slane %v1313, %v1317
    %v1352 = vunpack.c.l.b16 %v1281
    %v1353 = vunpack.c.l.b16 %v1282
    %v1354 = vunpack.c.l.b16 %v1283
    %v1355 = vunpack.c.l.b16 %v1284
    %v1356 = vunpack.c.l.b16 %v1285
    %v1357 = vunpack.c.l.b16 %v1286
    %v1358 = vunpack.c.l.b16 %v1287
    %v1359 = vunpack.c.l.b16 %v1288
    %v1360 = vunpack.c.l.b16 %v1289
    %v1361 = vunpack.c.l.b16 %v1290
    %v1362 = vunpack.c.l.b16 %v1291
    %v1363 = vunpack.c.l.b16 %v1292
    %v1364 = vunpack.c.l.b16 %v1293
    %v1365 = vunpack.c.l.b16 %v1294
    %v1366 = vunpack.c.l.b16 %v1295
    %v1367 = vunpack.c.l.b16 %v1296
    %v1368 = vunpack.c.l.b16 %v1297
    %v1369 = vunpack.c.l.b16 %v1298
    %v1370 = vunpack.c.l.b16 %v1299
    %v1371 = vunpack.c.l.b16 %v1300
    %v1372 = vunpack.c.l.b16 %v1301
    %v1373 = vunpack.c.l.b16 %v1302
    %v1374 = vunpack.c.l.b16 %v1303
    %v1375 = vunpack.c.l.b16 %v1304
    %v1376 = vunpack.c.l.b16 %v1305
    %v1377 = vunpack.c.l.b16 %v1306
    %v1378 = vunpack.c.l.b16 %v1307
    %v1379 = vunpack.c.l.b16 %v1308
    %v1380 = vunpack.c.l.b16 %v1309
    %v1381 = vunpack.c.l.b16 %v1310
    %v1382 = vunpack.c.l.b16 %v1311
    %v1383 = vunpack.c.l.b16 %v1312
    %v1384 = vpack.c.b16 %v1353, %v1352
    %v1385 = vpack.c.b16 %v1355, %v1354
    %v1386 = vpack.c.b16 %v1357, %v1356
    %v1387 = vpack.c.b16 %v1359, %v1358
    %v1388 = vpack.c.b16 %v1361, %v1360
    %v1389 = vpack.c.b16 %v1363, %v1362
    %v1390 = vpack.c.b16 %v1365, %v1364
    %v1391 = vpack.c.b16 %v1367, %v1366
    %v1392 = vpack.c.b16 %v1369, %v1368
    %v1393 = vpack.c.b16 %v1371, %v1370
    %v1394 = vpack.c.b16 %v1373, %v1372
    %v1395 = vpack.c.b16 %v1375, %v1374
    %v1396 = vpack.c.b16 %v1377, %v1376
    %v1397 = vpack.c.b16 %v1379, %v1378
    %v1398 = vpack.c.b16 %v1381, %v1380
    %v1399 = vpack.c.b16 %v1383, %v1382
    %1416 = vmatprep.subr.bf16.mxu0 0
    %1417 = vmatpush1.bf16.msra.mxu0 %v1384
    %1418 = vmatprep.subr.bf16.mxu0 0
    %1419 = vmatpush1.bf16.msra.mxu0 %v1385
    %1420 = vmatprep.subr.bf16.mxu0 0
    %1421 = vmatpush1.bf16.msra.mxu0 %v1386
    %1422 = vmatprep.subr.bf16.mxu0 0
    %1423 = vmatpush1.bf16.msra.mxu0 %v1387
    %1424 = vmatprep.subr.bf16.mxu0 0
    %1425 = vmatpush1.bf16.msra.mxu0 %v1388
    %1426 = vmatprep.subr.bf16.mxu0 0
    %1427 = vmatpush1.bf16.msra.mxu0 %v1389
    %1428 = vmatprep.subr.bf16.mxu0 0
    %1429 = vmatpush1.bf16.msra.mxu0 %v1390
    %1430 = vmatprep.subr.bf16.mxu0 0
    %1431 = vmatpush1.bf16.msra.mxu0 %v1391
    %1432 = vmatprep.subr.bf16.mxu0 0
    %1433 = vmatpush1.bf16.msra.mxu0 %v1392
    %1434 = vmatprep.subr.bf16.mxu0 0
    %1435 = vmatpush1.bf16.msra.mxu0 %v1393
    %1436 = vmatprep.subr.bf16.mxu0 0
    %1437 = vmatpush1.bf16.msra.mxu0 %v1394
    %1438 = vmatprep.subr.bf16.mxu0 0
    %1439 = vmatpush1.bf16.msra.mxu0 %v1395
    %1440 = vmatprep.subr.bf16.mxu0 0
    %1441 = vmatpush1.bf16.msra.mxu0 %v1396
    %1442 = vmatprep.subr.bf16.mxu0 0
    %1443 = vmatpush1.bf16.msra.mxu0 %v1397
    %1444 = vmatprep.subr.bf16.mxu0 0
    %1445 = vmatpush1.bf16.msra.mxu0 %v1398
    %1446 = vmatprep.subr.bf16.mxu0 0
    %1447 = vmatpush1.bf16.msra.mxu0 %v1399
    %1448 = vmatprep.mubr.bf16.mxu0 %v1280
    %1449 = vmatmul.mubr.bf16.gmra.mrb[0].mxu0 %v1279
    %v1450 = vpop.f32.mrb[0].mxu0
    %v1451 = vadd.f32 %v1318, %v1450
    %v1452 = vpop.f32.mrb[0].mxu0
    %v1453 = vpop.f32.mrb[0].mxu0
    %v1454 = vpop.f32.mrb[0].mxu0
    %1455 = vdwg.mxu0
    %1456 = vst [vmem:[#allocation17] sm:$0xff] %v1451
    %1457 = vst [vmem:[#allocation18] sm:$0xff] %v806
    %1458 = vst [vmem:[#allocation18 + $0x8] sm:$0xff] %v815
    // Predicated region
    $region106: #{tpu_custom_call.1} parent=1 // pred_check
      _
    $region107: #{tpu_custom_call.1} parent=1 // pred_check_branch
      %1460 = sbr.rel (0) target = $region109
    $region108: #{tpu_custom_call.1} parent=1 // pred_region
      %s1462 = ssub.s32 128, 128
      %1463 = vsyncadd [#allocation4], %s1462
      %s1465 = sshll.u32 [#allocation17], 4
      %s1466 = int_to_ptr.vmem [resolvable:$true] %s1465
      %1468 = dma.vmem_to_hbm [thread:$0]  %s1466, 128, %s17, [#allocation4]
    $region109: #{tpu_custom_call.1} parent=1 // pred_fallthru
      _
    // Predicated region
    $region110: #{tpu_custom_call.1} parent=1 // pred_check
      _
    $region111: #{tpu_custom_call.1} parent=1 // pred_check_branch
      %1470 = sbr.rel (0) target = $region113
    $region112: #{tpu_custom_call.1} parent=1 // pred_region
      %s1472 = ssub.s32 256, 256
      %1473 = vsyncadd [#allocation19], %s1472
      %s1475 = sshll.u32 [#allocation18], 4
      %s1476 = int_to_ptr.vmem [resolvable:$true] %s1475
      %1478 = dma.vmem_to_hbm [thread:$0]  %s1476, 256, %s18, [#allocation19]
    $region113: #{tpu_custom_call.1} parent=1 // pred_fallthru
      _
    // Predicated region
    $region114: #{tpu_custom_call.1} parent=1 // pred_check
      _
    $region115: #{tpu_custom_call.1} parent=1 // pred_check_branch
      %1480 = sbr.rel (0) target = $region117
    $region116: #{tpu_custom_call.1} parent=1 // pred_region
      %1481 = dma.done [#allocation4], 128
    $region117: #{tpu_custom_call.1} parent=1 // pred_fallthru
      _
    // Predicated region
    $region118: #{tpu_custom_call.1} parent=1 // pred_check
      _
    $region119: #{tpu_custom_call.1} parent=1 // pred_check_branch
      %1483 = sbr.rel (0) target = $region121
    $region120: #{tpu_custom_call.1} parent=1 // pred_region
      %1484 = dma.done [#allocation19], 256
    $region121: #{tpu_custom_call.1} parent=1 // pred_fallthru
      _
    %1485 = vsyncpa [#allocation3], 1
    %1486 = vsyncpa [#allocation6], 1
    %1487 = vsyncpa [#allocation9], 1
    %1488 = vsyncpa [#allocation12], 1
    %1489 = vsyncpa [#allocation15], 1
    %1490 = vsyncpa [#allocation4], 1
    %1491 = vsyncpa [#allocation19], 1

</llo_original>
